<compile_context>
chip_gen: v7x
topology: tpu7x:2x2x1
jax: 0.10.0
libtpu: 0.0.40
codegen_flags: <defaults>
</compile_context>

<pallas_src>
import functools

import jax
import jax.numpy as jnp
from jax import lax
from jax.experimental import pallas as pl
from jax.experimental.pallas import tpu as pltpu


def critic_kernel(src_ref, dst_ref, batch_ref, x0_ref, ea_ref,
                  we_ref, be_ref, w1_ref, b1_ref, gamma_ref, beta_ref,
                  w2_ref, b2_ref, wfc1_ref, wfc2_ref,
                  val_ref,
                  x_scr, gmask_scr, smask_scr):
    """One grid step = one GINE block; head fused into the last step."""
    l = pl.program_id(0)
    L = pl.num_programs(0)
    E = src_ref.shape[0]
    N = x0_ref.shape[0]
    G = val_ref.shape[0]

    # ---- one-time init: one-hot gather/scatter masks (exact in bf16) + x carry ----
    @pl.when(l == 0)
    def _init():
        gmask_scr[...] = (lax.broadcasted_iota(jnp.int32, (E, N), 1)
                          == src_ref[...]).astype(jnp.bfloat16)          # [E, N]
        smask_scr[...] = (lax.broadcasted_iota(jnp.int32, (N, E), 0)
                          == dst_ref[...]).astype(jnp.bfloat16)          # [N, E]
        x_scr[...] = x0_ref[...]

    x = x_scr[...]                                                       # [N, C] f32
    x_bf = x.astype(jnp.bfloat16)

    # ---- GINEConv block l (eps = 0), per-layer weights streamed by BlockSpec ----
    # Linear(edge_dim, c_in) on edge attributes (edge_attr pre-cast to bf16).
    ea_p = jnp.dot(ea_ref[...], we_ref[0],
                   preferred_element_type=jnp.float32) + be_ref[0]       # [E, C]
    # x_j = x[src]  (gather via one-hot matmul on the MXU)
    x_src = jnp.dot(gmask_scr[...], x_bf,
                    preferred_element_type=jnp.float32)                  # [E, C]
    # message = relu(x_j + lin(edge_attr))
    msg = jnp.maximum(x_src + ea_p, 0.0).astype(jnp.bfloat16)            # [E, C]
    # sum-aggregate to target nodes: standard [N,E] x [E,C] matmul (no transpose).
    agg = jnp.dot(smask_scr[...], msg,
                  preferred_element_type=jnp.float32)                    # [N, C]
    # (1 + eps) * x_i + agg, eps = 0
    h = agg + x                                                          # [N, C]

    # MLP: Linear -> BatchNorm1d (training-mode batch stats) -> ReLU -> Linear
    h1 = jnp.dot(h.astype(jnp.bfloat16), w1_ref[0],
                 preferred_element_type=jnp.float32) + b1_ref[0]         # [N, C]
    # Single-pass BN statistics: var = E[x^2] - mean^2 (biased), clamped >= 0.
    mean = jnp.mean(h1, axis=0, keepdims=True)
    var = jnp.maximum(jnp.mean(h1 * h1, axis=0, keepdims=True) - mean * mean, 0.0)
    h1n = (h1 - mean) * lax.rsqrt(var + 1e-5) * gamma_ref[0] + beta_ref[0]
    h1r = jnp.maximum(h1n, 0.0)
    h2 = jnp.dot(h1r.astype(jnp.bfloat16), w2_ref[0],
                 preferred_element_type=jnp.float32) + b2_ref[0]         # [N, C]

    # CriticNet outer ReLU after every GINE block; carry to next grid step.
    x_new = jnp.maximum(h2, 0.0)
    x_scr[...] = x_new

    # ---- critic head on the last layer step ----
    @pl.when(l == L - 1)
    def _head():
        pool_m = (lax.broadcasted_iota(jnp.int32, (G, N), 0)
                  == batch_ref[...]).astype(jnp.bfloat16)                # [G, N]
        hf1 = jnp.maximum(
            jnp.dot(x_new.astype(jnp.bfloat16), wfc1_ref[...],
                    preferred_element_type=jnp.float32), 0.0)            # [N, F]
        hf2 = jnp.maximum(
            jnp.dot(hf1.astype(jnp.bfloat16), wfc2_ref[...],
                    preferred_element_type=jnp.float32), 0.0)            # [N, O]
        # Fold sum(dim=1) before pooling: value = pool_m @ (hf2 @ ones).
        row = jnp.sum(hf2, axis=1, keepdims=True)                        # [N, 1]
        val_ref[...] = jnp.dot(pool_m, row.astype(jnp.bfloat16),
                               preferred_element_type=jnp.float32
                               ).astype(val_ref.dtype)                   # [G, 1]


def _critic_pallas_call(x_p, src, dst_row, batch_row, edge_attr_bf, p, num_graphs):
    N, C = x_p.shape
    E = src.shape[0]
    L, De, _ = p["we"].shape
    F = p["wfc1"].shape[1]
    O = p["wfc2"].shape[1]

    def full_spec(a):
        zeros = (0,) * a.ndim
        return pl.BlockSpec(a.shape, lambda l, _z=zeros: _z)

    def layer_spec(a):
        return pl.BlockSpec((1,) + a.shape[1:], lambda l: (l, 0, 0))

    args = (src, dst_row, batch_row, x_p, edge_attr_bf,
            p["we"], p["be"], p["w1"], p["b1"], p["gamma"], p["beta"],
            p["w2"], p["b2"], p["wfc1"], p["wfc2"])
    in_specs = [full_spec(src), full_spec(dst_row), full_spec(batch_row),
                full_spec(x_p), full_spec(edge_attr_bf),
                layer_spec(p["we"]), layer_spec(p["be"]),
                layer_spec(p["w1"]), layer_spec(p["b1"]),
                layer_spec(p["gamma"]), layer_spec(p["beta"]),
                layer_spec(p["w2"]), layer_spec(p["b2"]),
                full_spec(p["wfc1"]), full_spec(p["wfc2"])]

    # ---- cost estimate (advisory) ----
    flops = (L * 2 * (E * De * C + E * N * C + N * E * C + 2 * N * C * C)
             + 2 * (N * C * F + N * F * O + num_graphs * N))
    bytes_accessed = sum(int(a.size) * a.dtype.itemsize for a in args) + num_graphs * 4

    # ---- VMEM budget: resident inputs + 2 streamed weight slabs + scratch ----
    def nbytes(a):
        return int(a.size) * a.dtype.itemsize

    slab_bytes = sum(nbytes(p[k]) // L
                     for k in ("we", "be", "w1", "b1", "gamma", "beta", "w2", "b2"))
    resident = (nbytes(src) + nbytes(dst_row) + nbytes(batch_row) + nbytes(x_p)
                + nbytes(edge_attr_bf) + nbytes(p["wfc1"]) + nbytes(p["wfc2"])
                + 2 * slab_bytes                       # double-buffered per-layer slabs
                + N * C * 4                            # x carry scratch (f32)
                + 2 * E * N * 2                        # bf16 gather + scatter masks
                + num_graphs * 4)                      # output
    vmem_limit = min(int(resident * 2) + (8 << 20), 100 << 20)

    out = pl.pallas_call(
        critic_kernel,
        out_shape=jax.ShapeDtypeStruct((num_graphs, 1), jnp.float32),
        grid=(L,),
        in_specs=in_specs,
        out_specs=pl.BlockSpec((num_graphs, 1), lambda l: (0, 0)),
        scratch_shapes=[
            pltpu.VMEM((N, C), jnp.float32),        # carried node activations
            pltpu.VMEM((E, N), jnp.bfloat16),       # gather mask (built at l == 0)
            pltpu.VMEM((N, E), jnp.bfloat16),       # scatter mask (built at l == 0)
        ],
        compiler_params=pltpu.CompilerParams(
            dimension_semantics=("arbitrary",),
            vmem_limit_bytes=vmem_limit),
        cost_estimate=pl.CostEstimate(flops=flops,
                                      transcendentals=L * C,
                                      bytes_accessed=bytes_accessed),
    )(*args)
    return out[:, 0]


@functools.partial(jax.jit, static_argnames=("num_graphs",))
def critic_forward(x_p, src, dst_row, batch_row, edge_attr, params, *, num_graphs):
    # Host/wrapper-side bf16 cast of edge attributes (weights already bf16 in params).
    return _critic_pallas_call(x_p, src, dst_row, batch_row,
                               edge_attr.astype(jnp.bfloat16), params, num_graphs)


def init_critic_params(key, in_size, out_size, hide_size_list, hide_size_fc,
                       n_layers, edge_dim):
    """Deterministic synthetic parameters, zero-padded to a shared channel width.

    Linear weights stored as [in, out] (= PyTorch weight.T) and PRE-CAST to bf16
    (they feed bf16 MXU dots anyway); biases / BN affine stay f32. BatchNorm:
    gamma=1, beta=0 (PyTorch defaults). Zero padding keeps padded channels
    identically zero through every block."""
    size_layer_list = [in_size] + list(hide_size_list)
    c_max = max(size_layer_list)

    def pad_to(a, shape):
        out = jnp.zeros(shape, a.dtype)
        return out.at[tuple(slice(0, s) for s in a.shape)].set(a)

    we_l, be_l, w1_l, b1_l, g_l, bt_l, w2_l, b2_l = ([] for _ in range(8))
    for i in range(n_layers):
        c_in, c_out = size_layer_list[i], size_layer_list[i + 1]
        key, k_we, k_be, k_w1, k_b1, k_w2, k_b2 = jax.random.split(key, 7)
        we_l.append(pad_to(jax.random.normal(k_we, (edge_dim, c_in), jnp.float32) * 0.1,
                           (edge_dim, c_max)))
        be_l.append(pad_to(jax.random.normal(k_be, (1, c_in), jnp.float32) * 0.1,
                           (1, c_max)))
        w1_l.append(pad_to(jax.random.normal(k_w1, (c_in, c_out), jnp.float32) * 0.1,
                           (c_max, c_max)))
        b1_l.append(pad_to(jax.random.normal(k_b1, (1, c_out), jnp.float32) * 0.1,
                           (1, c_max)))
        g_l.append(pad_to(jnp.ones((1, c_out), jnp.float32), (1, c_max)))
        bt_l.append(jnp.zeros((1, c_max), jnp.float32))
        w2_l.append(pad_to(jax.random.normal(k_w2, (c_out, c_out), jnp.float32) * 0.1,
                           (c_max, c_max)))
        b2_l.append(pad_to(jax.random.normal(k_b2, (1, c_out), jnp.float32) * 0.1,
                           (1, c_max)))

    key, k_f1, k_f2 = jax.random.split(key, 3)
    c_last = size_layer_list[-1]
    wfc1 = pad_to(jax.random.normal(k_f1, (c_last, hide_size_fc), jnp.float32) * 0.1,
                  (c_max, hide_size_fc))
    wfc2 = jax.random.normal(k_f2, (hide_size_fc, out_size), jnp.float32) * 0.1

    params = {
        "we": jnp.stack(we_l).astype(jnp.bfloat16),
        "be": jnp.stack(be_l),
        "w1": jnp.stack(w1_l).astype(jnp.bfloat16),
        "b1": jnp.stack(b1_l),
        "gamma": jnp.stack(g_l), "beta": jnp.stack(bt_l),
        "w2": jnp.stack(w2_l).astype(jnp.bfloat16),
        "b2": jnp.stack(b2_l),
        "wfc1": wfc1.astype(jnp.bfloat16),
        "wfc2": wfc2.astype(jnp.bfloat16),
    }
    return params, c_max


if __name__ == "__main__":
    # Small synthetic graph (2 graphs of 8 nodes each).
    N = 16              # nodes
    E = 32              # edges
    in_size = 8
    out_size = 8        # fc2 output features
    edge_dim = 4
    hide_size_list = [16, 16, 8]
    hide_size_fc = 32
    n_layers = 3        # size_layer_list = [8, 16, 16, 8]
    num_graphs = 2

    key = jax.random.PRNGKey(0)
    key, kx, ke, ks, kd = jax.random.split(key, 5)
    x = jax.random.normal(kx, (N, in_size), jnp.float32)
    edge_attr = jax.random.normal(ke, (E, edge_dim), jnp.float32)
    src = jax.random.randint(ks, (E, 1), 0, N, dtype=jnp.int32)    # edge_index[0], [E, 1]
    dst = jax.random.randint(kd, (E, 1), 0, N, dtype=jnp.int32)    # edge_index[1]
    dst_row = dst.reshape(1, E)                                    # lane-major for [N,E] mask
    batch = jnp.repeat(jnp.arange(num_graphs, dtype=jnp.int32), N // num_graphs)
    batch_row = batch.reshape(1, N)

    params, c_max = init_critic_params(key, in_size, out_size, hide_size_list,
                                       hide_size_fc, n_layers, edge_dim)
    # Zero-pad node features to the shared channel width used by the stacked weights.
    x_p = jnp.zeros((N, c_max), jnp.float32).at[:, :in_size].set(x)

    value = critic_forward(x_p, src, dst_row, batch_row, edge_attr, params,
                           num_graphs=num_graphs)
    jax.block_until_ready(value)
    assert value.shape == (num_graphs,)
    assert bool(jnp.all(jnp.isfinite(value)))
    print("KERNEL_OK")
</pallas_src>

<mosaic_0001>
module attributes {stable_mosaic.version = 11 : i64} {
  func.func @critic_kernel(%arg0: i32, %arg1: memref<32x1xi32, #tpu.memory_space<vmem>>, %arg2: memref<1x32xi32, #tpu.memory_space<vmem>>, %arg3: memref<1x16xi32, #tpu.memory_space<vmem>>, %arg4: memref<16x16xf32, #tpu.memory_space<vmem>>, %arg5: memref<32x4xbf16, #tpu.memory_space<vmem>>, %arg6: memref<1x4x16xbf16, #tpu.memory_space<vmem>>, %arg7: memref<1x1x16xf32, #tpu.memory_space<vmem>>, %arg8: memref<1x16x16xbf16, #tpu.memory_space<vmem>>, %arg9: memref<1x1x16xf32, #tpu.memory_space<vmem>>, %arg10: memref<1x1x16xf32, #tpu.memory_space<vmem>>, %arg11: memref<1x1x16xf32, #tpu.memory_space<vmem>>, %arg12: memref<1x16x16xbf16, #tpu.memory_space<vmem>>, %arg13: memref<1x1x16xf32, #tpu.memory_space<vmem>>, %arg14: memref<16x32xbf16, #tpu.memory_space<vmem>>, %arg15: memref<32x8xbf16, #tpu.memory_space<vmem>>, %arg16: memref<2x1xf32, #tpu.memory_space<vmem>>, %arg17: memref<16x16xf32, #tpu.memory_space<vmem>>, %arg18: memref<32x16xbf16, #tpu.memory_space<vmem>>, %arg19: memref<16x32xbf16, #tpu.memory_space<vmem>>) attributes {dimension_semantics = [#tpu.dimension_semantics<arbitrary>], iteration_bounds = array<i64: 3>, scalar_prefetch = 0 : i64, scratch_operands = 3 : i64, tpu.core_type = #tpu.core_type<tc>, window_params = [{pipeline_mode = #tpu.pipeline_mode<synchronous>, transform_indices = @transform_0, window_bounds = array<i64: 32, 1>}, {pipeline_mode = #tpu.pipeline_mode<synchronous>, transform_indices = @transform_1, window_bounds = array<i64: 1, 32>}, {pipeline_mode = #tpu.pipeline_mode<synchronous>, transform_indices = @transform_2, window_bounds = array<i64: 1, 16>}, {pipeline_mode = #tpu.pipeline_mode<synchronous>, transform_indices = @transform_3, window_bounds = array<i64: 16, 16>}, {pipeline_mode = #tpu.pipeline_mode<synchronous>, transform_indices = @transform_4, window_bounds = array<i64: 32, 4>}, {transform_indices = @transform_5, window_bounds = array<i64: 1, 4, 16>}, {transform_indices = @transform_6, window_bounds = array<i64: 1, 1, 16>}, {transform_indices = @transform_7, window_bounds = array<i64: 1, 16, 16>}, {transform_indices = @transform_8, window_bounds = array<i64: 1, 1, 16>}, {transform_indices = @transform_9, window_bounds = array<i64: 1, 1, 16>}, {transform_indices = @transform_10, window_bounds = array<i64: 1, 1, 16>}, {transform_indices = @transform_11, window_bounds = array<i64: 1, 16, 16>}, {transform_indices = @transform_12, window_bounds = array<i64: 1, 1, 16>}, {pipeline_mode = #tpu.pipeline_mode<synchronous>, transform_indices = @transform_13, window_bounds = array<i64: 16, 32>}, {pipeline_mode = #tpu.pipeline_mode<synchronous>, transform_indices = @transform_14, window_bounds = array<i64: 32, 8>}, {pipeline_mode = #tpu.pipeline_mode<synchronous>, transform_indices = @transform_15, window_bounds = array<i64: 2, 1>}]} {
    %c0_i32 = arith.constant 0 : i32
    %0 = arith.cmpi eq, %arg0, %c0_i32 : i32
    %1 = arith.extui %0 : i1 to i32
    %c0_i32_0 = arith.constant 0 : i32
    %2 = arith.cmpi ne, %1, %c0_i32_0 : i32
    scf.if %2 {
      %74 = tpu.iota {dimensions = array<i32: 1>} : vector<32x16xi32>
      %c0_48 = arith.constant 0 : index
      %c0_49 = arith.constant 0 : index
      %75 = vector.load %arg1[%c0_48, %c0_49] : memref<32x1xi32, #tpu.memory_space<vmem>>, vector<32x1xi32>
      %76 = vector.broadcast %75 : vector<32x1xi32> to vector<32x16xi32>
      %77 = arith.cmpi eq, %74, %76 : vector<32x16xi32>
      %78 = arith.extui %77 : vector<32x16xi1> to vector<32x16xi32>
      %79 = arith.sitofp %78 : vector<32x16xi32> to vector<32x16xf32>
      %80 = arith.truncf %79 : vector<32x16xf32> to vector<32x16xbf16>
      %c0_50 = arith.constant 0 : index
      %c0_51 = arith.constant 0 : index
      %81 = vector.load %arg18[%c0_50, %c0_51] : memref<32x16xbf16, #tpu.memory_space<vmem>>, vector<32x16xbf16>
      tpu.vector_store %arg18[%c0_50, %c0_51], %80 {strides = array<i32>} : memref<32x16xbf16, #tpu.memory_space<vmem>>, vector<32x16xbf16>,
      %82 = tpu.iota {dimensions = array<i32: 0>} : vector<16x32xi32>
      %c0_52 = arith.constant 0 : index
      %c0_53 = arith.constant 0 : index
      %83 = vector.load %arg2[%c0_52, %c0_53] : memref<1x32xi32, #tpu.memory_space<vmem>>, vector<1x32xi32>
      %84 = vector.broadcast %83 : vector<1x32xi32> to vector<16x32xi32>
      %85 = arith.cmpi eq, %82, %84 : vector<16x32xi32>
      %86 = arith.extui %85 : vector<16x32xi1> to vector<16x32xi32>
      %87 = arith.sitofp %86 : vector<16x32xi32> to vector<16x32xf32>
      %88 = arith.truncf %87 : vector<16x32xf32> to vector<16x32xbf16>
      %c0_54 = arith.constant 0 : index
      %c0_55 = arith.constant 0 : index
      %89 = vector.load %arg19[%c0_54, %c0_55] : memref<16x32xbf16, #tpu.memory_space<vmem>>, vector<16x32xbf16>
      tpu.vector_store %arg19[%c0_54, %c0_55], %88 {strides = array<i32>} : memref<16x32xbf16, #tpu.memory_space<vmem>>, vector<16x32xbf16>,
      %c0_56 = arith.constant 0 : index
      %c0_57 = arith.constant 0 : index
      %90 = vector.load %arg4[%c0_56, %c0_57] : memref<16x16xf32, #tpu.memory_space<vmem>>, vector<16x16xf32>
      %c0_58 = arith.constant 0 : index
      %c0_59 = arith.constant 0 : index
      %91 = vector.load %arg17[%c0_58, %c0_59] : memref<16x16xf32, #tpu.memory_space<vmem>>, vector<16x16xf32>
      tpu.vector_store %arg17[%c0_58, %c0_59], %90 {strides = array<i32>} : memref<16x16xf32, #tpu.memory_space<vmem>>, vector<16x16xf32>,
    } else {
    }
    %c0 = arith.constant 0 : index
    %c0_1 = arith.constant 0 : index
    %3 = vector.load %arg17[%c0, %c0_1] : memref<16x16xf32, #tpu.memory_space<vmem>>, vector<16x16xf32>
    %4 = arith.truncf %3 : vector<16x16xf32> to vector<16x16xbf16>
    %c0_2 = arith.constant 0 : index
    %c0_3 = arith.constant 0 : index
    %5 = vector.load %arg5[%c0_2, %c0_3] : memref<32x4xbf16, #tpu.memory_space<vmem>>, vector<32x4xbf16>
    %c0_4 = arith.constant 0 : index
    %c0_5 = arith.constant 0 : index
    %c0_6 = arith.constant 0 : index
    %6 = vector.load %arg6[%c0_4, %c0_5, %c0_6] : memref<1x4x16xbf16, #tpu.memory_space<vmem>>, vector<1x4x16xbf16>
    %7 = vector.shape_cast %6 : vector<1x4x16xbf16> to vector<4x16xbf16>
    %cst = arith.constant dense<0.000000e+00> : vector<32x16xf32>
    %8 = tpu.matmul %5, %7, %cst {dimension_numbers = #tpu.dot_dimension_numbers<[1], [0], [0], [1], [0, 0, 1, 1], [], []>} : vector<32x4xbf16>, vector<4x16xbf16>, vector<32x16xf32> -> vector<32x16xf32>
    %c0_7 = arith.constant 0 : index
    %c0_8 = arith.constant 0 : index
    %c0_9 = arith.constant 0 : index
    %9 = vector.load %arg7[%c0_7, %c0_8, %c0_9] : memref<1x1x16xf32, #tpu.memory_space<vmem>>, vector<1x1x16xf32>
    %10 = vector.shape_cast %9 : vector<1x1x16xf32> to vector<1x16xf32>
    %11 = vector.broadcast %10 : vector<1x16xf32> to vector<32x16xf32>
    %12 = arith.addf %8, %11 : vector<32x16xf32>
    %c0_10 = arith.constant 0 : index
    %c0_11 = arith.constant 0 : index
    %13 = vector.load %arg18[%c0_10, %c0_11] : memref<32x16xbf16, #tpu.memory_space<vmem>>, vector<32x16xbf16>
    %cst_12 = arith.constant dense<0.000000e+00> : vector<32x16xf32>
    %14 = tpu.matmul %13, %4, %cst_12 {dimension_numbers = #tpu.dot_dimension_numbers<[1], [0], [0], [1], [0, 0, 1, 1], [], []>} : vector<32x16xbf16>, vector<16x16xbf16>, vector<32x16xf32> -> vector<32x16xf32>
    %15 = arith.addf %14, %12 : vector<32x16xf32>
    %cst_13 = arith.constant 0.000000e+00 : f32
    %16 = vector.broadcast %cst_13 : f32 to vector<32x16xf32>
    %17 = arith.maximumf %15, %16 : vector<32x16xf32>
    %18 = arith.truncf %17 : vector<32x16xf32> to vector<32x16xbf16>
    %c0_14 = arith.constant 0 : index
    %c0_15 = arith.constant 0 : index
    %19 = vector.load %arg19[%c0_14, %c0_15] : memref<16x32xbf16, #tpu.memory_space<vmem>>, vector<16x32xbf16>
    %cst_16 = arith.constant dense<0.000000e+00> : vector<16x16xf32>
    %20 = tpu.matmul %19, %18, %cst_16 {dimension_numbers = #tpu.dot_dimension_numbers<[1], [0], [0], [1], [0, 0, 1, 1], [], []>} : vector<16x32xbf16>, vector<32x16xbf16>, vector<16x16xf32> -> vector<16x16xf32>
    %21 = arith.addf %20, %3 : vector<16x16xf32>
    %22 = arith.truncf %21 : vector<16x16xf32> to vector<16x16xbf16>
    %c0_17 = arith.constant 0 : index
    %c0_18 = arith.constant 0 : index
    %c0_19 = arith.constant 0 : index
    %23 = vector.load %arg8[%c0_17, %c0_18, %c0_19] : memref<1x16x16xbf16, #tpu.memory_space<vmem>>, vector<1x16x16xbf16>
    %24 = vector.shape_cast %23 : vector<1x16x16xbf16> to vector<16x16xbf16>
    %cst_20 = arith.constant dense<0.000000e+00> : vector<16x16xf32>
    %25 = tpu.matmul %22, %24, %cst_20 {dimension_numbers = #tpu.dot_dimension_numbers<[1], [0], [0], [1], [0, 0, 1, 1], [], []>} : vector<16x16xbf16>, vector<16x16xbf16>, vector<16x16xf32> -> vector<16x16xf32>
    %c0_21 = arith.constant 0 : index
    %c0_22 = arith.constant 0 : index
    %c0_23 = arith.constant 0 : index
    %26 = vector.load %arg9[%c0_21, %c0_22, %c0_23] : memref<1x1x16xf32, #tpu.memory_space<vmem>>, vector<1x1x16xf32>
    %27 = vector.shape_cast %26 : vector<1x1x16xf32> to vector<1x16xf32>
    %28 = vector.broadcast %27 : vector<1x16xf32> to vector<16x16xf32>
    %29 = arith.addf %25, %28 : vector<16x16xf32>
    %cst_24 = arith.constant dense<0.000000e+00> : vector<16xf32>
    %30 = vector.multi_reduction <add>, %29, %cst_24 [0] : vector<16x16xf32> to vector<16xf32>
    %31 = vector.shape_cast %30 : vector<16xf32> to vector<1x16xf32>
    %cst_25 = arith.constant 1.600000e+01 : f32
    %32 = vector.broadcast %cst_25 : f32 to vector<1x16xf32>
    %33 = arith.divf %31, %32 : vector<1x16xf32>
    %34 = arith.mulf %29, %29 : vector<16x16xf32>
    %cst_26 = arith.constant dense<0.000000e+00> : vector<16xf32>
    %35 = vector.multi_reduction <add>, %34, %cst_26 [0] : vector<16x16xf32> to vector<16xf32>
    %36 = vector.shape_cast %35 : vector<16xf32> to vector<1x16xf32>
    %cst_27 = arith.constant 1.600000e+01 : f32
    %37 = vector.broadcast %cst_27 : f32 to vector<1x16xf32>
    %38 = arith.divf %36, %37 : vector<1x16xf32>
    %39 = arith.mulf %33, %33 : vector<1x16xf32>
    %40 = arith.subf %38, %39 : vector<1x16xf32>
    %cst_28 = arith.constant 0.000000e+00 : f32
    %41 = vector.broadcast %cst_28 : f32 to vector<1x16xf32>
    %42 = arith.maximumf %40, %41 : vector<1x16xf32>
    %43 = vector.broadcast %33 : vector<1x16xf32> to vector<16x16xf32>
    %44 = arith.subf %29, %43 : vector<16x16xf32>
    %cst_29 = arith.constant 9.99999974E-6 : f32
    %45 = vector.broadcast %cst_29 : f32 to vector<1x16xf32>
    %46 = arith.addf %42, %45 : vector<1x16xf32>
    %47 = math.rsqrt %46 : vector<1x16xf32>
    %48 = vector.broadcast %47 : vector<1x16xf32> to vector<16x16xf32>
    %49 = arith.mulf %44, %48 : vector<16x16xf32>
    %c0_30 = arith.constant 0 : index
    %c0_31 = arith.constant 0 : index
    %c0_32 = arith.constant 0 : index
    %50 = vector.load %arg10[%c0_30, %c0_31, %c0_32] : memref<1x1x16xf32, #tpu.memory_space<vmem>>, vector<1x1x16xf32>
    %51 = vector.shape_cast %50 : vector<1x1x16xf32> to vector<1x16xf32>
    %52 = vector.broadcast %51 : vector<1x16xf32> to vector<16x16xf32>
    %53 = arith.mulf %49, %52 : vector<16x16xf32>
    %c0_33 = arith.constant 0 : index
    %c0_34 = arith.constant 0 : index
    %c0_35 = arith.constant 0 : index
    %54 = vector.load %arg11[%c0_33, %c0_34, %c0_35] : memref<1x1x16xf32, #tpu.memory_space<vmem>>, vector<1x1x16xf32>
    %55 = vector.shape_cast %54 : vector<1x1x16xf32> to vector<1x16xf32>
    %56 = vector.broadcast %55 : vector<1x16xf32> to vector<16x16xf32>
    %57 = arith.addf %53, %56 : vector<16x16xf32>
    %cst_36 = arith.constant 0.000000e+00 : f32
    %58 = vector.broadcast %cst_36 : f32 to vector<16x16xf32>
    %59 = arith.maximumf %57, %58 : vector<16x16xf32>
    %60 = arith.truncf %59 : vector<16x16xf32> to vector<16x16xbf16>
    %c0_37 = arith.constant 0 : index
    %c0_38 = arith.constant 0 : index
    %c0_39 = arith.constant 0 : index
    %61 = vector.load %arg12[%c0_37, %c0_38, %c0_39] : memref<1x16x16xbf16, #tpu.memory_space<vmem>>, vector<1x16x16xbf16>
    %62 = vector.shape_cast %61 : vector<1x16x16xbf16> to vector<16x16xbf16>
    %cst_40 = arith.constant dense<0.000000e+00> : vector<16x16xf32>
    %63 = tpu.matmul %60, %62, %cst_40 {dimension_numbers = #tpu.dot_dimension_numbers<[1], [0], [0], [1], [0, 0, 1, 1], [], []>} : vector<16x16xbf16>, vector<16x16xbf16>, vector<16x16xf32> -> vector<16x16xf32>
    %c0_41 = arith.constant 0 : index
    %c0_42 = arith.constant 0 : index
    %c0_43 = arith.constant 0 : index
    %64 = vector.load %arg13[%c0_41, %c0_42, %c0_43] : memref<1x1x16xf32, #tpu.memory_space<vmem>>, vector<1x1x16xf32>
    %65 = vector.shape_cast %64 : vector<1x1x16xf32> to vector<1x16xf32>
    %66 = vector.broadcast %65 : vector<1x16xf32> to vector<16x16xf32>
    %67 = arith.addf %63, %66 : vector<16x16xf32>
    %cst_44 = arith.constant 0.000000e+00 : f32
    %68 = vector.broadcast %cst_44 : f32 to vector<16x16xf32>
    %69 = arith.maximumf %67, %68 : vector<16x16xf32>
    %c0_45 = arith.constant 0 : index
    %c0_46 = arith.constant 0 : index
    %70 = vector.load %arg17[%c0_45, %c0_46] : memref<16x16xf32, #tpu.memory_space<vmem>>, vector<16x16xf32>
    tpu.vector_store %arg17[%c0_45, %c0_46], %69 {strides = array<i32>} : memref<16x16xf32, #tpu.memory_space<vmem>>, vector<16x16xf32>,
    %c2_i32 = arith.constant 2 : i32
    %71 = arith.cmpi eq, %arg0, %c2_i32 : i32
    %72 = arith.extui %71 : i1 to i32
    %c0_i32_47 = arith.constant 0 : i32
    %73 = arith.cmpi ne, %72, %c0_i32_47 : i32
    scf.if %73 {
      %74 = tpu.iota {dimensions = array<i32: 0>} : vector<2x16xi32>
      %c0_48 = arith.constant 0 : index
      %c0_49 = arith.constant 0 : index
      %75 = vector.load %arg3[%c0_48, %c0_49] : memref<1x16xi32, #tpu.memory_space<vmem>>, vector<1x16xi32>
      %76 = vector.broadcast %75 : vector<1x16xi32> to vector<2x16xi32>
      %77 = arith.cmpi eq, %74, %76 : vector<2x16xi32>
      %78 = arith.extui %77 : vector<2x16xi1> to vector<2x16xi32>
      %79 = arith.sitofp %78 : vector<2x16xi32> to vector<2x16xf32>
      %80 = arith.truncf %79 : vector<2x16xf32> to vector<2x16xbf16>
      %81 = arith.truncf %69 : vector<16x16xf32> to vector<16x16xbf16>
      %c0_50 = arith.constant 0 : index
      %c0_51 = arith.constant 0 : index
      %82 = vector.load %arg14[%c0_50, %c0_51] : memref<16x32xbf16, #tpu.memory_space<vmem>>, vector<16x32xbf16>
      %cst_52 = arith.constant dense<0.000000e+00> : vector<16x32xf32>
      %83 = tpu.matmul %81, %82, %cst_52 {dimension_numbers = #tpu.dot_dimension_numbers<[1], [0], [0], [1], [0, 0, 1, 1], [], []>} : vector<16x16xbf16>, vector<16x32xbf16>, vector<16x32xf32> -> vector<16x32xf32>
      %cst_53 = arith.constant 0.000000e+00 : f32
      %84 = vector.broadcast %cst_53 : f32 to vector<16x32xf32>
      %85 = arith.maximumf %83, %84 : vector<16x32xf32>
      %86 = arith.truncf %85 : vector<16x32xf32> to vector<16x32xbf16>
      %c0_54 = arith.constant 0 : index
      %c0_55 = arith.constant 0 : index
      %87 = vector.load %arg15[%c0_54, %c0_55] : memref<32x8xbf16, #tpu.memory_space<vmem>>, vector<32x8xbf16>
      %cst_56 = arith.constant dense<0.000000e+00> : vector<16x8xf32>
      %88 = tpu.matmul %86, %87, %cst_56 {dimension_numbers = #tpu.dot_dimension_numbers<[1], [0], [0], [1], [0, 0, 1, 1], [], []>} : vector<16x32xbf16>, vector<32x8xbf16>, vector<16x8xf32> -> vector<16x8xf32>
      %cst_57 = arith.constant 0.000000e+00 : f32
      %89 = vector.broadcast %cst_57 : f32 to vector<16x8xf32>
      %90 = arith.maximumf %88, %89 : vector<16x8xf32>
      %cst_58 = arith.constant dense<0.000000e+00> : vector<16xf32>
      %91 = vector.multi_reduction <add>, %90, %cst_58 [1] : vector<16x8xf32> to vector<16xf32>
      %92 = vector.shape_cast %91 : vector<16xf32> to vector<16x1xf32>
      %93 = arith.truncf %92 : vector<16x1xf32> to vector<16x1xbf16>
      %cst_59 = arith.constant dense<0.000000e+00> : vector<2x1xf32>
      %94 = tpu.matmul %80, %93, %cst_59 {dimension_numbers = #tpu.dot_dimension_numbers<[1], [0], [0], [1], [0, 0, 1, 1], [], []>} : vector<2x16xbf16>, vector<16x1xbf16>, vector<2x1xf32> -> vector<2x1xf32>
      %c0_60 = arith.constant 0 : index
      %c0_61 = arith.constant 0 : index
      %95 = vector.load %arg16[%c0_60, %c0_61] : memref<2x1xf32, #tpu.memory_space<vmem>>, vector<2x1xf32>
      tpu.vector_store %arg16[%c0_60, %c0_61], %94 {strides = array<i32>} : memref<2x1xf32, #tpu.memory_space<vmem>>, vector<2x1xf32>,
    } else {
    }
    return
  }
  func.func @transform_0(%arg0: i32) -> (i32, i32) {
    %c0_i32 = arith.constant 0 : i32
    %c0_i32_0 = arith.constant 0 : i32
    %c0_i32_1 = arith.constant 0 : i32
    return %c0_i32, %c0_i32_0 : i32, i32
  }
  func.func @transform_1(%arg0: i32) -> (i32, i32) {
    %c0_i32 = arith.constant 0 : i32
    %c0_i32_0 = arith.constant 0 : i32
    %c0_i32_1 = arith.constant 0 : i32
    return %c0_i32, %c0_i32_0 : i32, i32
  }
  func.func @transform_2(%arg0: i32) -> (i32, i32) {
    %c0_i32 = arith.constant 0 : i32
    %c0_i32_0 = arith.constant 0 : i32
    %c0_i32_1 = arith.constant 0 : i32
    return %c0_i32, %c0_i32_0 : i32, i32
  }
  func.func @transform_3(%arg0: i32) -> (i32, i32) {
    %c0_i32 = arith.constant 0 : i32
    %c0_i32_0 = arith.constant 0 : i32
    %c0_i32_1 = arith.constant 0 : i32
    return %c0_i32, %c0_i32_0 : i32, i32
  }
  func.func @transform_4(%arg0: i32) -> (i32, i32) {
    %c0_i32 = arith.constant 0 : i32
    %c0_i32_0 = arith.constant 0 : i32
    %c0_i32_1 = arith.constant 0 : i32
    return %c0_i32, %c0_i32_0 : i32, i32
  }
  func.func @transform_5(%arg0: i32) -> (i32, i32, i32) {
    %c0_i32 = arith.constant 0 : i32
    %c0_i32_0 = arith.constant 0 : i32
    %c0_i32_1 = arith.constant 0 : i32
    return %arg0, %c0_i32, %c0_i32_0 : i32, i32, i32
  }
  func.func @transform_6(%arg0: i32) -> (i32, i32, i32) {
    %c0_i32 = arith.constant 0 : i32
    %c0_i32_0 = arith.constant 0 : i32
    %c0_i32_1 = arith.constant 0 : i32
    return %arg0, %c0_i32, %c0_i32_0 : i32, i32, i32
  }
  func.func @transform_7(%arg0: i32) -> (i32, i32, i32) {
    %c0_i32 = arith.constant 0 : i32
    %c0_i32_0 = arith.constant 0 : i32
    %c0_i32_1 = arith.constant 0 : i32
    return %arg0, %c0_i32, %c0_i32_0 : i32, i32, i32
  }
  func.func @transform_8(%arg0: i32) -> (i32, i32, i32) {
    %c0_i32 = arith.constant 0 : i32
    %c0_i32_0 = arith.constant 0 : i32
    %c0_i32_1 = arith.constant 0 : i32
    return %arg0, %c0_i32, %c0_i32_0 : i32, i32, i32
  }
  func.func @transform_9(%arg0: i32) -> (i32, i32, i32) {
    %c0_i32 = arith.constant 0 : i32
    %c0_i32_0 = arith.constant 0 : i32
    %c0_i32_1 = arith.constant 0 : i32
    return %arg0, %c0_i32, %c0_i32_0 : i32, i32, i32
  }
  func.func @transform_10(%arg0: i32) -> (i32, i32, i32) {
    %c0_i32 = arith.constant 0 : i32
    %c0_i32_0 = arith.constant 0 : i32
    %c0_i32_1 = arith.constant 0 : i32
    return %arg0, %c0_i32, %c0_i32_0 : i32, i32, i32
  }
  func.func @transform_11(%arg0: i32) -> (i32, i32, i32) {
    %c0_i32 = arith.constant 0 : i32
    %c0_i32_0 = arith.constant 0 : i32
    %c0_i32_1 = arith.constant 0 : i32
    return %arg0, %c0_i32, %c0_i32_0 : i32, i32, i32
  }
  func.func @transform_12(%arg0: i32) -> (i32, i32, i32) {
    %c0_i32 = arith.constant 0 : i32
    %c0_i32_0 = arith.constant 0 : i32
    %c0_i32_1 = arith.constant 0 : i32
    return %arg0, %c0_i32, %c0_i32_0 : i32, i32, i32
  }
  func.func @transform_13(%arg0: i32) -> (i32, i32) {
    %c0_i32 = arith.constant 0 : i32
    %c0_i32_0 = arith.constant 0 : i32
    %c0_i32_1 = arith.constant 0 : i32
    return %c0_i32, %c0_i32_0 : i32, i32
  }
  func.func @transform_14(%arg0: i32) -> (i32, i32) {
    %c0_i32 = arith.constant 0 : i32
    %c0_i32_0 = arith.constant 0 : i32
    %c0_i32_1 = arith.constant 0 : i32
    return %c0_i32, %c0_i32_0 : i32, i32
  }
  func.func @transform_15(%arg0: i32) -> (i32, i32) {
    %c0_i32 = arith.constant 0 : i32
    %c0_i32_0 = arith.constant 0 : i32
    %c0_i32_1 = arith.constant 0 : i32
    return %c0_i32, %c0_i32_0 : i32, i32
  }
}

</mosaic_0001>

<llo_original>
// kernel: critic_forward.1
$region0: #{critic_forward.1}
  #allocation0 [shape = 'u32[]', space=smem, size = 0x4, offset = 0x4, fixed_abs, tag = 'smem constant byte address 0x4 - core index']
  #allocation1 [shape = 'u32[144,128]{1,0:T(1,128)}', space=vmem, size = 0x12000, scoped, tag = 'internal scratch']
  #allocation2 [shape = 'f32[16,16]{1,0:T(8,128)}', space=vmem, size = 0x2000, scoped, tag = 'scratch operand']
  #allocation3 [shape = 'bf16[32,16]{1,0:T(16,128)(2,1)}', space=vmem, size = 0x2000, scoped, tag = 'scratch operand']
  #allocation4 [shape = 'bf16[16,32]{1,0:T(16,128)(2,1)}', space=vmem, size = 0x1000, scoped, tag = 'scratch operand']
  %s0 = inlined_call_operand.vmem [shape: s32[32,1], index: 0, kind: input, shape index: {}]
  %s1 = inlined_call_operand.hbm [shape: s32[1,32], index: 1, kind: input, shape index: {}]
  %s2 = inlined_call_operand.hbm [shape: s32[1,16], index: 2, kind: input, shape index: {}]
  %s3 = inlined_call_operand.vmem [shape: f32[16,16], index: 3, kind: input, shape index: {}]
  %s4 = inlined_call_operand.vmem [shape: bf16[32,4], index: 4, kind: input, shape index: {}]
  %s5 = inlined_call_operand.vmem [shape: bf16[3,4,16], index: 5, kind: input, shape index: {}]
  %s6 = inlined_call_operand.vmem [shape: f32[3,1,16], index: 6, kind: input, shape index: {}]
  %s7 = inlined_call_operand.vmem [shape: bf16[3,16,16], index: 7, kind: input, shape index: {}]
  %s8 = inlined_call_operand.vmem [shape: f32[3,1,16], index: 8, kind: input, shape index: {}]
  %s9 = inlined_call_operand.vmem [shape: f32[3,1,16], index: 9, kind: input, shape index: {}]
  %s10 = inlined_call_operand.vmem [shape: f32[3,1,16], index: 10, kind: input, shape index: {}]
  %s11 = inlined_call_operand.vmem [shape: bf16[3,16,16], index: 11, kind: input, shape index: {}]
  %s12 = inlined_call_operand.hbm [shape: f32[3,1,16], index: 12, kind: input, shape index: {}]
  %s13 = inlined_call_operand.vmem [shape: bf16[16,32], index: 13, kind: input, shape index: {}]
  %s14 = inlined_call_operand.vmem [shape: bf16[32,8], index: 14, kind: input, shape index: {}]
  %s15 = inlined_call_operand.vmem [shape: f32[2,1], index: 15, kind: output, shape index: {}]
  %s16 = sld [smem:[#allocation0]]
  $region113: #{critic_forward.1} parent=0
    _
  %s18 = ssub.s32 1, %s16
  %s19 = scalar_select 0, %s18, %s16
  $region1: #{critic_forward.1} parent=0
    #allocation5 [shape = 'u8[512]{0}', space=vmem, size = 0x400, scoped, tag = 'input window, operand 1, single buffered']
    #allocation6 [shape = 's32[2]{0}', space=sflag, size = 0x8, scoped, tag = 'scoped memory for critic_forward.1']
    #allocation7 [shape = 'u8[512]{0}', space=vmem, size = 0x400, scoped, tag = 'input window, operand 2, single buffered']
    #allocation8 [shape = 's32[1]{0}', space=sflag, size = 0x4, scoped, tag = 'scoped memory for critic_forward.1']
    #allocation9 [shape = 'u8[1024]{0}', space=vmem, size = 0x400, scoped, tag = 'input window, operand 12']
    %20 = vsyncpa [#allocation6], 0
    %21 = vsyncpa [#allocation8], 0
    loop: start=0, step=1, limit=5
    $region2: #{critic_forward.1} parent=1 // loop_pre_header
      _
    $region3: #{critic_forward.1} parent=1 // loop_header
      %s23 = sphi 0, %s27
      %p24 = scmp.ge.s32.totalorder %s23, 5
      %s31 = sphi 0, %s31
      %s33 = sphi 0, %s31
      %s34 = sphi 0, %s33
      %s48 = sphi 0, %s34
      %s52 = sphi 0, %s52
      %s54 = sphi 0, %s52
      %s55 = sphi 0, %s54
      %s69 = sphi 0, %s55
      %s73 = sphi 0, %s73
      %s75 = sphi 0, %s73
      %s76 = sphi 0, %s75
      %s90 = sphi 0, %s76
      %s94 = sphi 0, %s94
      %s96 = sphi 0, %s94
      %s97 = sphi 0, %s96
      %s111 = sphi 0, %s97
      %s115 = sphi 0, %s115
      %s117 = sphi 0, %s115
      %s118 = sphi 0, %s117
      %s132 = sphi 0, %s118
      %s138 = sphi 0, %s140
      %s141 = sphi 0, %s138
      %s142 = sphi 0, %s141
      %s158 = sphi 0, %s142
      %s164 = sphi 0, %s166
      %s167 = sphi 0, %s164
      %s168 = sphi 0, %s167
      %s184 = sphi 0, %s168
      %s190 = sphi 0, %s192
      %s193 = sphi 0, %s190
      %s194 = sphi 0, %s193
      %s210 = sphi 0, %s194
      %s216 = sphi 0, %s218
      %s219 = sphi 0, %s216
      %s220 = sphi 0, %s219
      %s236 = sphi 0, %s220
      %s242 = sphi 0, %s244
      %s245 = sphi 0, %s242
      %s246 = sphi 0, %s245
      %s262 = sphi 0, %s246
      %s268 = sphi 0, %s270
      %s271 = sphi 0, %s268
      %s272 = sphi 0, %s271
      %s288 = sphi 0, %s272
      %s294 = sphi 0, %s296
      %s297 = sphi 0, %s294
      %s298 = sphi 0, %s297
      %s314 = sphi 0, %s298
      %s320 = sphi 0, %s322
      %s323 = sphi 0, %s320
      %s324 = sphi 0, %s323
      %s340 = sphi 0, %s324
      %s344 = sphi 0, %s344
      %s346 = sphi 0, %s344
      %s347 = sphi 0, %s346
      %s361 = sphi 0, %s347
      %s365 = sphi 0, %s365
      %s367 = sphi 0, %s365
      %s368 = sphi 0, %s367
      %s382 = sphi 0, %s368
      %s386 = sphi 0, %s386
      %s388 = sphi 0, %s386
      %s389 = sphi 0, %s388
      %s403 = sphi 0, %s389
    $region4: #{critic_forward.1} parent=1 // loop_header_branch
      %26 = sbr.rel (%p24) target = $region8
    $region5: #{critic_forward.1} parent=1 // loop_body
      %s28 = ssub.s32 %s23, 1
      %s29 = ssub.s32 %s23, 2
      %s30 = sadd.s32 %s23, 1
      %s32 = sadd.s32 %s31, 1
      %p35 = scmp.eq.s32.totalorder %s23, 2
      %p36 = scmp.ne.s32.totalorder %s31, %s33
      %p37 = scmp.eq.s32.totalorder %s23, 0
      %p38 = por %p36, %p37
      %p39 = scmp.ne.s32.totalorder %s31, %s33
      %p40 = scmp.eq.s32.totalorder %s28, 2
      %p41 = por %p39, %p40
      %p42 = scmp.ne.s32.totalorder %s33, %s34
      %p43 = scmp.eq.s32.totalorder %s28, 0
      %p44 = por %p42, %p43
      %p45 = scmp.ne.s32.totalorder %s33, %s34
      %p46 = scmp.eq.s32.totalorder %s29, 2
      %p47 = por %p45, %p46
      %p49 = scmp.ne.s32.totalorder %s34, %s48
      %p50 = scmp.eq.s32.totalorder %s29, 0
      %p51 = por %p49, %p50
      %s53 = sadd.s32 %s52, 1
      %p56 = scmp.eq.s32.totalorder %s23, 2
      %p57 = scmp.ne.s32.totalorder %s52, %s54
      %p58 = scmp.eq.s32.totalorder %s23, 0
      %p59 = por %p57, %p58
      %p60 = scmp.ne.s32.totalorder %s52, %s54
      %p61 = scmp.eq.s32.totalorder %s28, 2
      %p62 = por %p60, %p61
      %p63 = scmp.ne.s32.totalorder %s54, %s55
      %p64 = scmp.eq.s32.totalorder %s28, 0
      %p65 = por %p63, %p64
      %p66 = scmp.ne.s32.totalorder %s54, %s55
      %p67 = scmp.eq.s32.totalorder %s29, 2
      %p68 = por %p66, %p67
      %p70 = scmp.ne.s32.totalorder %s55, %s69
      %p71 = scmp.eq.s32.totalorder %s29, 0
      %p72 = por %p70, %p71
      %s74 = sadd.s32 %s73, 1
      %p77 = scmp.eq.s32.totalorder %s23, 2
      %p78 = scmp.ne.s32.totalorder %s73, %s75
      %p79 = scmp.eq.s32.totalorder %s23, 0
      %p80 = por %p78, %p79
      %p81 = scmp.ne.s32.totalorder %s73, %s75
      %p82 = scmp.eq.s32.totalorder %s28, 2
      %p83 = por %p81, %p82
      %p84 = scmp.ne.s32.totalorder %s75, %s76
      %p85 = scmp.eq.s32.totalorder %s28, 0
      %p86 = por %p84, %p85
      %p87 = scmp.ne.s32.totalorder %s75, %s76
      %p88 = scmp.eq.s32.totalorder %s29, 2
      %p89 = por %p87, %p88
      %p91 = scmp.ne.s32.totalorder %s76, %s90
      %p92 = scmp.eq.s32.totalorder %s29, 0
      %p93 = por %p91, %p92
      %s95 = sadd.s32 %s94, 1
      %p98 = scmp.eq.s32.totalorder %s23, 2
      %p99 = scmp.ne.s32.totalorder %s94, %s96
      %p100 = scmp.eq.s32.totalorder %s23, 0
      %p101 = por %p99, %p100
      %p102 = scmp.ne.s32.totalorder %s94, %s96
      %p103 = scmp.eq.s32.totalorder %s28, 2
      %p104 = por %p102, %p103
      %p105 = scmp.ne.s32.totalorder %s96, %s97
      %p106 = scmp.eq.s32.totalorder %s28, 0
      %p107 = por %p105, %p106
      %p108 = scmp.ne.s32.totalorder %s96, %s97
      %p109 = scmp.eq.s32.totalorder %s29, 2
      %p110 = por %p108, %p109
      %p112 = scmp.ne.s32.totalorder %s97, %s111
      %p113 = scmp.eq.s32.totalorder %s29, 0
      %p114 = por %p112, %p113
      %s116 = sadd.s32 %s115, 1
      %p119 = scmp.eq.s32.totalorder %s23, 2
      %p120 = scmp.ne.s32.totalorder %s115, %s117
      %p121 = scmp.eq.s32.totalorder %s23, 0
      %p122 = por %p120, %p121
      %p123 = scmp.ne.s32.totalorder %s115, %s117
      %p124 = scmp.eq.s32.totalorder %s28, 2
      %p125 = por %p123, %p124
      %p126 = scmp.ne.s32.totalorder %s117, %s118
      %p127 = scmp.eq.s32.totalorder %s28, 0
      %p128 = por %p126, %p127
      %p129 = scmp.ne.s32.totalorder %s117, %s118
      %p130 = scmp.eq.s32.totalorder %s29, 2
      %p131 = por %p129, %p130
      %p133 = scmp.ne.s32.totalorder %s118, %s132
      %p134 = scmp.eq.s32.totalorder %s29, 0
      %p135 = por %p133, %p134
      %s136 = ssub.s32 %s23, %s30
      %p137 = scmp.eq.s32.totalorder %s136, 0
      %s139 = sadd.s32 %s138, 1
      %s140 = scalar_select %p137, %s138, %s139
      %p143 = pneg %p137
      %p144 = scmp.eq.s32.totalorder %s23, 2
      %p145 = por %p143, %p144
      %p146 = scmp.ne.s32.totalorder %s138, %s141
      %p147 = scmp.eq.s32.totalorder %s23, 0
      %p148 = por %p146, %p147
      %p149 = scmp.ne.s32.totalorder %s138, %s141
      %p150 = scmp.eq.s32.totalorder %s28, 2
      %p151 = por %p149, %p150
      %p152 = scmp.ne.s32.totalorder %s141, %s142
      %p153 = scmp.eq.s32.totalorder %s28, 0
      %p154 = por %p152, %p153
      %p155 = scmp.ne.s32.totalorder %s141, %s142
      %p156 = scmp.eq.s32.totalorder %s29, 2
      %p157 = por %p155, %p156
      %p159 = scmp.ne.s32.totalorder %s142, %s158
      %p160 = scmp.eq.s32.totalorder %s29, 0
      %p161 = por %p159, %p160
      %s162 = ssub.s32 %s23, %s30
      %p163 = scmp.eq.s32.totalorder %s162, 0
      %s165 = sadd.s32 %s164, 1
      %s166 = scalar_select %p163, %s164, %s165
      %p169 = pneg %p163
      %p170 = scmp.eq.s32.totalorder %s23, 2
      %p171 = por %p169, %p170
      %p172 = scmp.ne.s32.totalorder %s164, %s167
      %p173 = scmp.eq.s32.totalorder %s23, 0
      %p174 = por %p172, %p173
      %p175 = scmp.ne.s32.totalorder %s164, %s167
      %p176 = scmp.eq.s32.totalorder %s28, 2
      %p177 = por %p175, %p176
      %p178 = scmp.ne.s32.totalorder %s167, %s168
      %p179 = scmp.eq.s32.totalorder %s28, 0
      %p180 = por %p178, %p179
      %p181 = scmp.ne.s32.totalorder %s167, %s168
      %p182 = scmp.eq.s32.totalorder %s29, 2
      %p183 = por %p181, %p182
      %p185 = scmp.ne.s32.totalorder %s168, %s184
      %p186 = scmp.eq.s32.totalorder %s29, 0
      %p187 = por %p185, %p186
      %s188 = ssub.s32 %s23, %s30
      %p189 = scmp.eq.s32.totalorder %s188, 0
      %s191 = sadd.s32 %s190, 1
      %s192 = scalar_select %p189, %s190, %s191
      %p195 = pneg %p189
      %p196 = scmp.eq.s32.totalorder %s23, 2
      %p197 = por %p195, %p196
      %p198 = scmp.ne.s32.totalorder %s190, %s193
      %p199 = scmp.eq.s32.totalorder %s23, 0
      %p200 = por %p198, %p199
      %p201 = scmp.ne.s32.totalorder %s190, %s193
      %p202 = scmp.eq.s32.totalorder %s28, 2
      %p203 = por %p201, %p202
      %p204 = scmp.ne.s32.totalorder %s193, %s194
      %p205 = scmp.eq.s32.totalorder %s28, 0
      %p206 = por %p204, %p205
      %p207 = scmp.ne.s32.totalorder %s193, %s194
      %p208 = scmp.eq.s32.totalorder %s29, 2
      %p209 = por %p207, %p208
      %p211 = scmp.ne.s32.totalorder %s194, %s210
      %p212 = scmp.eq.s32.totalorder %s29, 0
      %p213 = por %p211, %p212
      %s214 = ssub.s32 %s23, %s30
      %p215 = scmp.eq.s32.totalorder %s214, 0
      %s217 = sadd.s32 %s216, 1
      %s218 = scalar_select %p215, %s216, %s217
      %p221 = pneg %p215
      %p222 = scmp.eq.s32.totalorder %s23, 2
      %p223 = por %p221, %p222
      %p224 = scmp.ne.s32.totalorder %s216, %s219
      %p225 = scmp.eq.s32.totalorder %s23, 0
      %p226 = por %p224, %p225
      %p227 = scmp.ne.s32.totalorder %s216, %s219
      %p228 = scmp.eq.s32.totalorder %s28, 2
      %p229 = por %p227, %p228
      %p230 = scmp.ne.s32.totalorder %s219, %s220
      %p231 = scmp.eq.s32.totalorder %s28, 0
      %p232 = por %p230, %p231
      %p233 = scmp.ne.s32.totalorder %s219, %s220
      %p234 = scmp.eq.s32.totalorder %s29, 2
      %p235 = por %p233, %p234
      %p237 = scmp.ne.s32.totalorder %s220, %s236
      %p238 = scmp.eq.s32.totalorder %s29, 0
      %p239 = por %p237, %p238
      %s240 = ssub.s32 %s23, %s30
      %p241 = scmp.eq.s32.totalorder %s240, 0
      %s243 = sadd.s32 %s242, 1
      %s244 = scalar_select %p241, %s242, %s243
      %p247 = pneg %p241
      %p248 = scmp.eq.s32.totalorder %s23, 2
      %p249 = por %p247, %p248
      %p250 = scmp.ne.s32.totalorder %s242, %s245
      %p251 = scmp.eq.s32.totalorder %s23, 0
      %p252 = por %p250, %p251
      %p253 = scmp.ne.s32.totalorder %s242, %s245
      %p254 = scmp.eq.s32.totalorder %s28, 2
      %p255 = por %p253, %p254
      %p256 = scmp.ne.s32.totalorder %s245, %s246
      %p257 = scmp.eq.s32.totalorder %s28, 0
      %p258 = por %p256, %p257
      %p259 = scmp.ne.s32.totalorder %s245, %s246
      %p260 = scmp.eq.s32.totalorder %s29, 2
      %p261 = por %p259, %p260
      %p263 = scmp.ne.s32.totalorder %s246, %s262
      %p264 = scmp.eq.s32.totalorder %s29, 0
      %p265 = por %p263, %p264
      %s266 = ssub.s32 %s23, %s30
      %p267 = scmp.eq.s32.totalorder %s266, 0
      %s269 = sadd.s32 %s268, 1
      %s270 = scalar_select %p267, %s268, %s269
      %p273 = pneg %p267
      %p274 = scmp.eq.s32.totalorder %s23, 2
      %p275 = por %p273, %p274
      %p276 = scmp.ne.s32.totalorder %s268, %s271
      %p277 = scmp.eq.s32.totalorder %s23, 0
      %p278 = por %p276, %p277
      %p279 = scmp.ne.s32.totalorder %s268, %s271
      %p280 = scmp.eq.s32.totalorder %s28, 2
      %p281 = por %p279, %p280
      %p282 = scmp.ne.s32.totalorder %s271, %s272
      %p283 = scmp.eq.s32.totalorder %s28, 0
      %p284 = por %p282, %p283
      %p285 = scmp.ne.s32.totalorder %s271, %s272
      %p286 = scmp.eq.s32.totalorder %s29, 2
      %p287 = por %p285, %p286
      %p289 = scmp.ne.s32.totalorder %s272, %s288
      %p290 = scmp.eq.s32.totalorder %s29, 0
      %p291 = por %p289, %p290
      %s292 = ssub.s32 %s23, %s30
      %p293 = scmp.eq.s32.totalorder %s292, 0
      %s295 = sadd.s32 %s294, 1
      %s296 = scalar_select %p293, %s294, %s295
      %p299 = pneg %p293
      %p300 = scmp.eq.s32.totalorder %s23, 2
      %p301 = por %p299, %p300
      %p302 = scmp.ne.s32.totalorder %s294, %s297
      %p303 = scmp.eq.s32.totalorder %s23, 0
      %p304 = por %p302, %p303
      %p305 = scmp.ne.s32.totalorder %s294, %s297
      %p306 = scmp.eq.s32.totalorder %s28, 2
      %p307 = por %p305, %p306
      %p308 = scmp.ne.s32.totalorder %s297, %s298
      %p309 = scmp.eq.s32.totalorder %s28, 0
      %p310 = por %p308, %p309
      %p311 = scmp.ne.s32.totalorder %s297, %s298
      %p312 = scmp.eq.s32.totalorder %s29, 2
      %p313 = por %p311, %p312
      %p315 = scmp.ne.s32.totalorder %s298, %s314
      %p316 = scmp.eq.s32.totalorder %s29, 0
      %p317 = por %p315, %p316
      %s318 = ssub.s32 %s23, %s30
      %p319 = scmp.eq.s32.totalorder %s318, 0
      %s321 = sadd.s32 %s320, 1
      %s322 = scalar_select %p319, %s320, %s321
      %p325 = pneg %p319
      %p326 = scmp.eq.s32.totalorder %s23, 2
      %p327 = por %p325, %p326
      %p328 = scmp.ne.s32.totalorder %s320, %s323
      %p329 = scmp.eq.s32.totalorder %s23, 0
      %p330 = por %p328, %p329
      %p331 = scmp.ne.s32.totalorder %s320, %s323
      %p332 = scmp.eq.s32.totalorder %s28, 2
      %p333 = por %p331, %p332
      %p334 = scmp.ne.s32.totalorder %s323, %s324
      %p335 = scmp.eq.s32.totalorder %s28, 0
      %p336 = por %p334, %p335
      %p337 = scmp.ne.s32.totalorder %s323, %s324
      %p338 = scmp.eq.s32.totalorder %s29, 2
      %p339 = por %p337, %p338
      %p341 = scmp.ne.s32.totalorder %s324, %s340
      %p342 = scmp.eq.s32.totalorder %s29, 0
      %p343 = por %p341, %p342
      %s345 = sadd.s32 %s344, 1
      %p348 = scmp.eq.s32.totalorder %s23, 2
      %p349 = scmp.ne.s32.totalorder %s344, %s346
      %p350 = scmp.eq.s32.totalorder %s23, 0
      %p351 = por %p349, %p350
      %p352 = scmp.ne.s32.totalorder %s344, %s346
      %p353 = scmp.eq.s32.totalorder %s28, 2
      %p354 = por %p352, %p353
      %p355 = scmp.ne.s32.totalorder %s346, %s347
      %p356 = scmp.eq.s32.totalorder %s28, 0
      %p357 = por %p355, %p356
      %p358 = scmp.ne.s32.totalorder %s346, %s347
      %p359 = scmp.eq.s32.totalorder %s29, 2
      %p360 = por %p358, %p359
      %p362 = scmp.ne.s32.totalorder %s347, %s361
      %p363 = scmp.eq.s32.totalorder %s29, 0
      %p364 = por %p362, %p363
      %s366 = sadd.s32 %s365, 1
      %p369 = scmp.eq.s32.totalorder %s23, 2
      %p370 = scmp.ne.s32.totalorder %s365, %s367
      %p371 = scmp.eq.s32.totalorder %s23, 0
      %p372 = por %p370, %p371
      %p373 = scmp.ne.s32.totalorder %s365, %s367
      %p374 = scmp.eq.s32.totalorder %s28, 2
      %p375 = por %p373, %p374
      %p376 = scmp.ne.s32.totalorder %s367, %s368
      %p377 = scmp.eq.s32.totalorder %s28, 0
      %p378 = por %p376, %p377
      %p379 = scmp.ne.s32.totalorder %s367, %s368
      %p380 = scmp.eq.s32.totalorder %s29, 2
      %p381 = por %p379, %p380
      %p383 = scmp.ne.s32.totalorder %s368, %s382
      %p384 = scmp.eq.s32.totalorder %s29, 0
      %p385 = por %p383, %p384
      %s387 = sadd.s32 %s386, 1
      %p390 = scmp.eq.s32.totalorder %s23, 2
      %p391 = scmp.ne.s32.totalorder %s386, %s388
      %p392 = scmp.eq.s32.totalorder %s23, 0
      %p393 = por %p391, %p392
      %p394 = scmp.ne.s32.totalorder %s386, %s388
      %p395 = scmp.eq.s32.totalorder %s28, 2
      %p396 = por %p394, %p395
      %p397 = scmp.ne.s32.totalorder %s388, %s389
      %p398 = scmp.eq.s32.totalorder %s28, 0
      %p399 = por %p397, %p398
      %p400 = scmp.ne.s32.totalorder %s388, %s389
      %p401 = scmp.eq.s32.totalorder %s29, 2
      %p402 = por %p400, %p401
      %p404 = scmp.ne.s32.totalorder %s389, %s403
      %p405 = scmp.eq.s32.totalorder %s29, 0
      %p406 = por %p404, %p405
      %p407 = scmp.le.s32.totalorder 1, %s23
      %p408 = scmp.lt.s32.totalorder %s23, 4
      %p409 = pnand %p407, %p408
      %p410 = pneg %p409
      // Predicated region
      $region9: #{critic_forward.1} parent=5 // pred_check
        _
      $region10: #{critic_forward.1} parent=5 // pred_check_branch
        %412 = sbr.rel (%p409) target = $region12
      $region11: #{critic_forward.1} parent=5 // pred_region
        %s413 = ssub.s32 %s23, 1
        // Predicated region
        $region13: #{critic_forward.1} parent=11 // pred_check
          %p414 = pneg %p44
        $region14: #{critic_forward.1} parent=11 // pred_check_branch
          %416 = sbr.rel (%p414) target = $region16
        $region15: #{critic_forward.1} parent=11 // pred_region
          _
        $region16: #{critic_forward.1} parent=11 // pred_fallthru
          _
        // Predicated region
        $region17: #{critic_forward.1} parent=11 // pred_check
          %p417 = pneg %p65
        $region18: #{critic_forward.1} parent=11 // pred_check_branch
          %419 = sbr.rel (%p417) target = $region20
        $region19: #{critic_forward.1} parent=11 // pred_region
          %s421 = ssub.s32 16, 16
          %422 = vsyncadd [#allocation6], %s421
          %s424 = sshll.u32 [#allocation5], 4
          %s425 = int_to_ptr.vmem [resolvable:$true] %s424
          %427 = dma.hbm_to_vmem [thread:$0]  %s1, 16, %s425, [#allocation6]
        $region20: #{critic_forward.1} parent=11 // pred_fallthru
          _
        // Predicated region
        $region21: #{critic_forward.1} parent=11 // pred_check
          %p428 = pneg %p86
        $region22: #{critic_forward.1} parent=11 // pred_check_branch
          %430 = sbr.rel (%p428) target = $region24
        $region23: #{critic_forward.1} parent=11 // pred_region
          %s432 = ssub.s32 16, 16
          %433 = vsyncadd [#allocation8], %s432
          %s435 = sshll.u32 [#allocation7], 4
          %s436 = int_to_ptr.vmem [resolvable:$true] %s435
          %438 = dma.hbm_to_vmem [thread:$0]  %s2, 16, %s436, [#allocation8]
        $region24: #{critic_forward.1} parent=11 // pred_fallthru
          _
        // Predicated region
        $region25: #{critic_forward.1} parent=11 // pred_check
          %p439 = pneg %p107
        $region26: #{critic_forward.1} parent=11 // pred_check_branch
          %441 = sbr.rel (%p439) target = $region28
        $region27: #{critic_forward.1} parent=11 // pred_region
          _
        $region28: #{critic_forward.1} parent=11 // pred_fallthru
          _
        // Predicated region
        $region29: #{critic_forward.1} parent=11 // pred_check
          %p442 = pneg %p128
        $region30: #{critic_forward.1} parent=11 // pred_check_branch
          %444 = sbr.rel (%p442) target = $region32
        $region31: #{critic_forward.1} parent=11 // pred_region
          _
        $region32: #{critic_forward.1} parent=11 // pred_fallthru
          _
        // Predicated region
        $region33: #{critic_forward.1} parent=11 // pred_check
          %p445 = pneg %p357
        $region34: #{critic_forward.1} parent=11 // pred_check_branch
          %447 = sbr.rel (%p445) target = $region36
        $region35: #{critic_forward.1} parent=11 // pred_region
          _
        $region36: #{critic_forward.1} parent=11 // pred_fallthru
          _
        // Predicated region
        $region37: #{critic_forward.1} parent=11 // pred_check
          %p448 = pneg %p378
        $region38: #{critic_forward.1} parent=11 // pred_check_branch
          %450 = sbr.rel (%p448) target = $region40
        $region39: #{critic_forward.1} parent=11 // pred_region
          _
        $region40: #{critic_forward.1} parent=11 // pred_fallthru
          _
      $region12: #{critic_forward.1} parent=5 // pred_fallthru
        _
      %p451 = scmp.lt.s32.totalorder %s23, 3
      // Predicated region
      $region41: #{critic_forward.1} parent=5 // pred_check
        %p452 = pneg %p451
      $region42: #{critic_forward.1} parent=5 // pred_check_branch
        %454 = sbr.rel (%p452) target = $region44
      $region43: #{critic_forward.1} parent=5 // pred_region
        // Predicated region
        $region45: #{critic_forward.1} parent=43 // pred_check
          %p455 = pneg %p148
        $region46: #{critic_forward.1} parent=43 // pred_check_branch
          %457 = sbr.rel (%p455) target = $region48
        $region47: #{critic_forward.1} parent=43 // pred_region
          %p458 = scmp.lt.s32.totalorder %s23, 2
          %s459 = scalar_select %p458, %s23, 2
          %s460 = smul.addr %s459, 2
          %s461 = scalar_lea.vmem %s5, %s460
        $region48: #{critic_forward.1} parent=43 // pred_fallthru
          _
        // Predicated region
        $region49: #{critic_forward.1} parent=43 // pred_check
          %p462 = pneg %p174
        $region50: #{critic_forward.1} parent=43 // pred_check_branch
          %464 = sbr.rel (%p462) target = $region52
        $region51: #{critic_forward.1} parent=43 // pred_region
          %p465 = scmp.lt.s32.totalorder %s23, 2
          %s466 = scalar_select %p465, %s23, 2
          %s467 = scalar_lea.vmem %s6, %s466
        $region52: #{critic_forward.1} parent=43 // pred_fallthru
          _
        // Predicated region
        $region53: #{critic_forward.1} parent=43 // pred_check
          %p468 = pneg %p200
        $region54: #{critic_forward.1} parent=43 // pred_check_branch
          %470 = sbr.rel (%p468) target = $region56
        $region55: #{critic_forward.1} parent=43 // pred_region
          %p471 = scmp.lt.s32.totalorder %s23, 2
          %s472 = scalar_select %p471, %s23, 2
          %s473 = smul.addr %s472, 2
          %s474 = smul.addr %s473, 4
          %s475 = scalar_lea.vmem %s7, %s474
        $region56: #{critic_forward.1} parent=43 // pred_fallthru
          _
        // Predicated region
        $region57: #{critic_forward.1} parent=43 // pred_check
          %p476 = pneg %p226
        $region58: #{critic_forward.1} parent=43 // pred_check_branch
          %478 = sbr.rel (%p476) target = $region60
        $region59: #{critic_forward.1} parent=43 // pred_region
          %p479 = scmp.lt.s32.totalorder %s23, 2
          %s480 = scalar_select %p479, %s23, 2
          %s481 = scalar_lea.vmem %s8, %s480
        $region60: #{critic_forward.1} parent=43 // pred_fallthru
          _
        // Predicated region
        $region61: #{critic_forward.1} parent=43 // pred_check
          %p482 = pneg %p252
        $region62: #{critic_forward.1} parent=43 // pred_check_branch
          %484 = sbr.rel (%p482) target = $region64
        $region63: #{critic_forward.1} parent=43 // pred_region
          %p485 = scmp.lt.s32.totalorder %s23, 2
          %s486 = scalar_select %p485, %s23, 2
          %s487 = scalar_lea.vmem %s9, %s486
        $region64: #{critic_forward.1} parent=43 // pred_fallthru
          _
        // Predicated region
        $region65: #{critic_forward.1} parent=43 // pred_check
          %p488 = pneg %p278
        $region66: #{critic_forward.1} parent=43 // pred_check_branch
          %490 = sbr.rel (%p488) target = $region68
        $region67: #{critic_forward.1} parent=43 // pred_region
          %p491 = scmp.lt.s32.totalorder %s23, 2
          %s492 = scalar_select %p491, %s23, 2
          %s493 = scalar_lea.vmem %s10, %s492
        $region68: #{critic_forward.1} parent=43 // pred_fallthru
          _
        // Predicated region
        $region69: #{critic_forward.1} parent=43 // pred_check
          %p494 = pneg %p304
        $region70: #{critic_forward.1} parent=43 // pred_check_branch
          %496 = sbr.rel (%p494) target = $region72
        $region71: #{critic_forward.1} parent=43 // pred_region
          %p497 = scmp.lt.s32.totalorder %s23, 2
          %s498 = scalar_select %p497, %s23, 2
          %s499 = smul.addr %s498, 2
          %s500 = smul.addr %s499, 4
          %s501 = scalar_lea.vmem %s11, %s500
        $region72: #{critic_forward.1} parent=43 // pred_fallthru
          _
        // Predicated region
        $region73: #{critic_forward.1} parent=43 // pred_check
          %p502 = pneg %p330
        $region74: #{critic_forward.1} parent=43 // pred_check_branch
          %504 = sbr.rel (%p502) target = $region76
        $region75: #{critic_forward.1} parent=43 // pred_region
          %s505 = sand.u32 %s23, 1
          %s506 = scalar_lea.sflag [#allocation6], %s505
          %s507 = sand.u32 %s320, 1
          %s508 = scalar_lea.vmem [#allocation9], %s507
          %s510 = ssub.s32 16, 16
          %511 = vsyncadd %s506, %s510
          %s512 = smul.addr %s23, 16
          %s513 = scalar_lea.hbm %s12, %s512
          %s515 = sshll.u32 %s508, 4
          %s516 = int_to_ptr.vmem [resolvable:$true] %s515
          %518 = dma.hbm_to_vmem [thread:$0]  %s513, 16, %s516, %s506
        $region76: #{critic_forward.1} parent=43 // pred_fallthru
          _
      $region44: #{critic_forward.1} parent=5 // pred_fallthru
        _
      %p519 = scmp.le.s32.totalorder 1, %s23
      %p520 = scmp.lt.s32.totalorder %s23, 4
      %p521 = pnand %p519, %p520
      %p522 = pneg %p521
      // Predicated region
      $region77: #{critic_forward.1} parent=5 // pred_check
        _
      $region78: #{critic_forward.1} parent=5 // pred_check_branch
        %524 = sbr.rel (%p521) target = $region80
      $region79: #{critic_forward.1} parent=5 // pred_region
        %s525 = ssub.s32 %s23, 1
        // Predicated region
        $region81: #{critic_forward.1} parent=79 // pred_check
          %p526 = pneg %p65
        $region82: #{critic_forward.1} parent=79 // pred_check_branch
          %528 = sbr.rel (%p526) target = $region84
        $region83: #{critic_forward.1} parent=79 // pred_region
          %529 = dma.done [#allocation6], 16
        $region84: #{critic_forward.1} parent=79 // pred_fallthru
          _
        // Predicated region
        $region85: #{critic_forward.1} parent=79 // pred_check
          %p530 = pneg %p86
        $region86: #{critic_forward.1} parent=79 // pred_check_branch
          %532 = sbr.rel (%p530) target = $region88
        $region87: #{critic_forward.1} parent=79 // pred_region
          %533 = dma.done [#allocation8], 16
        $region88: #{critic_forward.1} parent=79 // pred_fallthru
          _
        %s534 = sand.u32 %s28, 1
        %s535 = scalar_lea.sflag [#allocation6], %s534
        %s536 = sand.u32 %s323, 1
        %s537 = scalar_lea.vmem [#allocation9], %s536
        // Predicated region
        $region89: #{critic_forward.1} parent=79 // pred_check
          %p538 = pneg %p336
        $region90: #{critic_forward.1} parent=79 // pred_check_branch
          %540 = sbr.rel (%p538) target = $region92
        $region91: #{critic_forward.1} parent=79 // pred_region
          %541 = dma.done %s535, 16
        $region92: #{critic_forward.1} parent=79 // pred_fallthru
          _
        %p542 = pneg %p44
        %p543 = pneg %p41
        %p544 = pneg %p65
        %p545 = pneg %p62
        %p546 = pneg %p86
        %p547 = pneg %p83
        %p548 = pneg %p107
        %p549 = pneg %p104
        %p550 = pneg %p128
        %p551 = pneg %p125
        %p552 = scmp.lt.s32.totalorder %s28, 2
        %s553 = scalar_select %p552, %s28, 2
        %s554 = smul.addr %s553, 2
        %s555 = scalar_lea.vmem %s5, %s554
        %p556 = pneg %p154
        %p557 = pneg %p151
        %p558 = scmp.lt.s32.totalorder %s28, 2
        %s559 = scalar_select %p558, %s28, 2
        %s560 = scalar_lea.vmem %s6, %s559
        %p561 = pneg %p180
        %p562 = pneg %p177
        %p563 = scmp.lt.s32.totalorder %s28, 2
        %s564 = scalar_select %p563, %s28, 2
        %s565 = smul.addr %s564, 2
        %s566 = smul.addr %s565, 4
        %s567 = scalar_lea.vmem %s7, %s566
        %p568 = pneg %p206
        %p569 = pneg %p203
        %p570 = scmp.lt.s32.totalorder %s28, 2
        %s571 = scalar_select %p570, %s28, 2
        %s572 = scalar_lea.vmem %s8, %s571
        %p573 = pneg %p232
        %p574 = pneg %p229
        %p575 = scmp.lt.s32.totalorder %s28, 2
        %s576 = scalar_select %p575, %s28, 2
        %s577 = scalar_lea.vmem %s9, %s576
        %p578 = pneg %p258
        %p579 = pneg %p255
        %p580 = scmp.lt.s32.totalorder %s28, 2
        %s581 = scalar_select %p580, %s28, 2
        %s582 = scalar_lea.vmem %s10, %s581
        %p583 = pneg %p284
        %p584 = pneg %p281
        %p585 = scmp.lt.s32.totalorder %s28, 2
        %s586 = scalar_select %p585, %s28, 2
        %s587 = smul.addr %s586, 2
        %s588 = smul.addr %s587, 4
        %s589 = scalar_lea.vmem %s11, %s588
        %p590 = pneg %p310
        %p591 = pneg %p307
        %s592 = sand.u32 %s28, 1
        %s593 = scalar_lea.sflag [#allocation6], %s592
        %s594 = sand.u32 %s323, 1
        %s595 = scalar_lea.vmem [#allocation9], %s594
        %p596 = pneg %p336
        %p597 = pneg %p333
        %p598 = pneg %p357
        %p599 = pneg %p354
        %p600 = pneg %p378
        %p601 = pneg %p375
        %p602 = pneg %p399
        %p603 = pneg %p396
        %p604 = scmp.lt.s32.totalorder %s28, 2
        %s605 = scalar_select %p604, %s28, 2
        %s606 = smul.addr %s605, 2
        %s607 = scalar_lea.vmem %s5, %s606
        %p608 = scmp.lt.s32.totalorder %s28, 2
        %s609 = scalar_select %p608, %s28, 2
        %s610 = scalar_lea.vmem %s6, %s609
        %p611 = scmp.lt.s32.totalorder %s28, 2
        %s612 = scalar_select %p611, %s28, 2
        %s613 = smul.addr %s612, 2
        %s614 = smul.addr %s613, 4
        %s615 = scalar_lea.vmem %s7, %s614
        %p616 = scmp.lt.s32.totalorder %s28, 2
        %s617 = scalar_select %p616, %s28, 2
        %s618 = scalar_lea.vmem %s8, %s617
        %p619 = scmp.lt.s32.totalorder %s28, 2
        %s620 = scalar_select %p619, %s28, 2
        %s621 = scalar_lea.vmem %s9, %s620
        %p622 = scmp.lt.s32.totalorder %s28, 2
        %s623 = scalar_select %p622, %s28, 2
        %s624 = scalar_lea.vmem %s10, %s623
        %p625 = scmp.lt.s32.totalorder %s28, 2
        %s626 = scalar_select %p625, %s28, 2
        %s627 = smul.addr %s626, 2
        %s628 = smul.addr %s627, 4
        %s629 = scalar_lea.vmem %s11, %s628
        %p631 = scmp.eq.s32.totalorder %s28, 0
        // Predicated region
        $region93: #{critic_forward.1} parent=79 // pred_check
          %p632 = pneg %p631
        $region94: #{critic_forward.1} parent=79 // pred_check_branch
          %634 = sbr.rel (%p632) target = $region96
        $region95: #{critic_forward.1} parent=79 // pred_region
          %v635 = vlaneseq
          %v636 = vand.u32 %v635, 127
          %v637 = vld [vmem:[%s0] sm:$0xff]
          %v638 = vld [vmem:[%s0 + $0x8] sm:$0xff]
          %v639 = vld [vmem:[%s0 + $0x10] sm:$0xff]
          %v640 = vld [vmem:[%s0 + $0x18] sm:$0xff]
          %641 = vset.pattern.permute.xlu0 0
          %642 = vperm.xlu0 %641, %v637
          %v643 = vpop.permute.xlu0 %642
          %644 = vset.pattern.permute.xlu0 0
          %645 = vperm.xlu0 %644, %v638
          %v646 = vpop.permute.xlu0 %645
          %647 = vset.pattern.permute.xlu0 0
          %648 = vperm.xlu0 %647, %v639
          %v649 = vpop.permute.xlu0 %648
          %650 = vset.pattern.permute.xlu0 0
          %651 = vperm.xlu0 %650, %v640
          %v652 = vpop.permute.xlu0 %651
          %vm653 = vcmp.eq.s32.totalorder %v636, %v643
          %vm654 = vcmp.eq.s32.totalorder %v636, %v646
          %vm655 = vcmp.eq.s32.totalorder %v636, %v649
          %vm656 = vcmp.eq.s32.totalorder %v636, %v652
          %v657 = vsel %vm653, 1, 0
          %v658 = vsel %vm654, 1, 0
          %v659 = vsel %vm655, 1, 0
          %v660 = vsel %vm656, 1, 0
          %v661 = vcvt.s32.f32 %v657
          %v662 = vcvt.s32.f32 %v658
          %v663 = vcvt.s32.f32 %v659
          %v664 = vcvt.s32.f32 %v660
          %v665 = vpack.c.bf16 %v662, %v661
          %v666 = vpack.c.bf16 %v664, %v663
          %vm667 = vcmask 130048
          %668 = vst.msk [vmem:[#allocation3] sm:$0xff] %vm667, %v665
          %669 = vst.msk [vmem:[#allocation3 + $0x8] sm:$0xff] %vm667, %v666
          %v670 = vlaneseq
          %v671 = vshrl.u32 %v670, 7
          %v672 = vadd.s32 %v671, 8
          %v673 = vld [vmem:[#allocation5] sm:$0x1]
          %v674 = vlaneseq
          %v675 = vshrl.u32 %v674, 7
          %v676 = vsub.s32 0, %v675
          %v677 = vrot.slane %v673, %v676
          %vm678 = vcmp.eq.s32.totalorder %v671, %v677
          %vm679 = vcmp.eq.s32.totalorder %v672, %v677
          %v680 = vsel %vm678, 1, 0
          %v681 = vsel %vm679, 1, 0
          %v682 = vcvt.s32.f32 %v680
          %v683 = vcvt.s32.f32 %v681
          %v684 = vpack.c.bf16 %v683, %v682
          %vm685 = vcmask 261120
          %686 = vst.msk [vmem:[#allocation4] sm:$0xff] %vm685, %v684
          %v687 = vld [vmem:[%s3] sm:$0xff]
          %v688 = vld [vmem:[%s3 + $0x8] sm:$0xff]
          %689 = vst.msk [vmem:[#allocation2] sm:$0xff] %vm667, %v687
          %690 = vst.msk [vmem:[#allocation2 + $0x8] sm:$0xff] %vm667, %v688
        $region96: #{critic_forward.1} parent=79 // pred_fallthru
          _
        %v691 = vld [vmem:[#allocation2] sm:$0xff]
        %v692 = vld [vmem:[#allocation2 + $0x8] sm:$0xff]
        %v693 = vpack.c.bf16 %v692, %v691
        %v694 = vld [vmem:[%s4] sm:$0xf]
        %v695 = vld [vmem:[%s4 + $0x4] sm:$0xf]
        %v696 = vld [vmem:[%s4 + $0x8] sm:$0xf]
        %v697 = vld [vmem:[%s4 + $0xc] sm:$0xf]
        %v698 = vld [vmem:[%s607] sm:$0x3]
        %v699 = vld [vmem:[%s610] sm:$0x1]
        %v701 = vlaneseq
        %v702 = vshrl.u32 %v701, 7
        %v703 = vsub.s32 0, %v702
        %v704 = vrot.slane %v699, %v703
        %v710 = vunpack.c.l.b16 %v694
        %v711 = vunpack.c.l.b16 %v695
        %v712 = vunpack.c.l.b16 %v696
        %v713 = vunpack.c.l.b16 %v697
        %v714 = vpack.c.b16 %v711, %v710
        %v715 = vpack.c.b16 %v713, %v712
        %vm716 = vcmask 31744
        %v718 = vsel %vm716, %v714, 0
        %v721 = vsel %vm716, %v715, 0
        %vm723 = vcmask 1041408
        %v725 = vsel %vm723, %v698, 0
        %727 = vmatprep.subr.bf16.mxu0 0
        %728 = vmatpush1.bf16.msra.mxu0 %v725
        %729 = vmatprep.subr.bf16.mxu0 0
        %730 = vmatpush1.bf16.msra.mxu0 0
        %731 = vmatprep.subr.bf16.mxu0 0
        %732 = vmatpush1.bf16.msra.mxu0 0
        %733 = vmatprep.subr.bf16.mxu0 0
        %734 = vmatpush1.bf16.msra.mxu0 0
        %735 = vmatprep.subr.bf16.mxu0 0
        %736 = vmatpush1.bf16.msra.mxu0 0
        %737 = vmatprep.subr.bf16.mxu0 0
        %738 = vmatpush1.bf16.msra.mxu0 0
        %739 = vmatprep.subr.bf16.mxu0 0
        %740 = vmatpush1.bf16.msra.mxu0 0
        %741 = vmatprep.subr.bf16.mxu0 0
        %742 = vmatpush1.bf16.msra.mxu0 0
        %743 = vmatprep.subr.bf16.mxu0 0
        %744 = vmatpush1.bf16.msra.mxu0 0
        %745 = vmatprep.subr.bf16.mxu0 0
        %746 = vmatpush1.bf16.msra.mxu0 0
        %747 = vmatprep.subr.bf16.mxu0 0
        %748 = vmatpush1.bf16.msra.mxu0 0
        %749 = vmatprep.subr.bf16.mxu0 0
        %750 = vmatpush1.bf16.msra.mxu0 0
        %751 = vmatprep.subr.bf16.mxu0 0
        %752 = vmatpush1.bf16.msra.mxu0 0
        %753 = vmatprep.subr.bf16.mxu0 0
        %754 = vmatpush1.bf16.msra.mxu0 0
        %755 = vmatprep.subr.bf16.mxu0 0
        %756 = vmatpush1.bf16.msra.mxu0 0
        %757 = vmatprep.subr.bf16.mxu0 0
        %758 = vmatpush1.bf16.msra.mxu0 0
        %759 = vmatprep.mubr.bf16.mxu0 0
        %760 = vmatmul.mubr.bf16.gmra.mrb[0].mxu0 %v718
        %v761 = vpop.f32.mrb[0].mxu0
        %v762 = vadd.f32 %v704, %v761
        %v763 = vpop.f32.mrb[0].mxu0
        %v764 = vpop.f32.mrb[0].mxu0
        %v765 = vadd.f32 %v704, %v764
        %v766 = vpop.f32.mrb[0].mxu0
        %767 = vmatprep.mubr.bf16.mxu0 0
        %768 = vmatmul.mubr.bf16.gmra.mrb[0].mxu0 %v721
        %v769 = vpop.f32.mrb[0].mxu0
        %v770 = vadd.f32 %v704, %v769
        %v771 = vpop.f32.mrb[0].mxu0
        %v772 = vpop.f32.mrb[0].mxu0
        %v773 = vadd.f32 %v704, %v772
        %v774 = vpop.f32.mrb[0].mxu0
        %775 = vdwg.mxu0
        %v776 = vld [vmem:[#allocation3] sm:$0xff]
        %v777 = vld [vmem:[#allocation3 + $0x8] sm:$0xff]
        %vm778 = vcmask 130048
        %v780 = vsel %vm778, %v776, 0
        %v783 = vsel %vm778, %v777, 0
        %785 = vmatprep.subr.bf16.mxu0 0
        %786 = vmatpush1.bf16.msra.mxu0 %v693
        %787 = vmatprep.subr.bf16.mxu0 0
        %788 = vmatpush1.bf16.msra.mxu0 0
        %789 = vmatprep.subr.bf16.mxu0 0
        %790 = vmatpush1.bf16.msra.mxu0 0
        %791 = vmatprep.subr.bf16.mxu0 0
        %792 = vmatpush1.bf16.msra.mxu0 0
        %793 = vmatprep.subr.bf16.mxu0 0
        %794 = vmatpush1.bf16.msra.mxu0 0
        %795 = vmatprep.subr.bf16.mxu0 0
        %796 = vmatpush1.bf16.msra.mxu0 0
        %797 = vmatprep.subr.bf16.mxu0 0
        %798 = vmatpush1.bf16.msra.mxu0 0
        %799 = vmatprep.subr.bf16.mxu0 0
        %800 = vmatpush1.bf16.msra.mxu0 0
        %801 = vmatprep.subr.bf16.mxu0 0
        %802 = vmatpush1.bf16.msra.mxu0 0
        %803 = vmatprep.subr.bf16.mxu0 0
        %804 = vmatpush1.bf16.msra.mxu0 0
        %805 = vmatprep.subr.bf16.mxu0 0
        %806 = vmatpush1.bf16.msra.mxu0 0
        %807 = vmatprep.subr.bf16.mxu0 0
        %808 = vmatpush1.bf16.msra.mxu0 0
        %809 = vmatprep.subr.bf16.mxu0 0
        %810 = vmatpush1.bf16.msra.mxu0 0
        %811 = vmatprep.subr.bf16.mxu0 0
        %812 = vmatpush1.bf16.msra.mxu0 0
        %813 = vmatprep.subr.bf16.mxu0 0
        %814 = vmatpush1.bf16.msra.mxu0 0
        %815 = vmatprep.subr.bf16.mxu0 0
        %816 = vmatpush1.bf16.msra.mxu0 0
        %817 = vmatprep.mubr.bf16.mxu0 0
        %818 = vmatmul.mubr.bf16.gmra.mrb[0].mxu0 %v780
        %v819 = vpop.f32.mrb[0].mxu0
        %v820 = vadd.f32 %v762, %v819
        %v821 = vpop.f32.mrb[0].mxu0
        %v822 = vpop.f32.mrb[0].mxu0
        %v823 = vadd.f32 %v765, %v822
        %v824 = vpop.f32.mrb[0].mxu0
        %825 = vmatprep.mubr.bf16.mxu0 0
        %826 = vmatmul.mubr.bf16.gmra.mrb[0].mxu0 %v783
        %v827 = vpop.f32.mrb[0].mxu0
        %v828 = vadd.f32 %v770, %v827
        %v829 = vpop.f32.mrb[0].mxu0
        %v830 = vpop.f32.mrb[0].mxu0
        %v831 = vadd.f32 %v773, %v830
        %v832 = vpop.f32.mrb[0].mxu0
        %833 = vdwg.mxu0
        %v834 = vmax.f32 %v820, 0.0
        %v835 = vmax.f32 %v823, 0.0
        %v836 = vmax.f32 %v828, 0.0
        %v837 = vmax.f32 %v831, 0.0
        %v838 = vpack.c.bf16 %v835, %v834
        %v839 = vpack.c.bf16 %v837, %v836
        %v840 = vld [vmem:[#allocation4] sm:$0xff]
        %vm841 = vcmask 261120
        %v843 = vsel %vm841, %v840, 0
        %845 = vmatprep.subr.bf16.mxu0 0
        %846 = vmatpush1.bf16.msra.mxu0 %v838
        %847 = vmatprep.subr.bf16.mxu0 0
        %848 = vmatpush1.bf16.msra.mxu0 %v839
        %849 = vmatprep.subr.bf16.mxu0 0
        %850 = vmatpush1.bf16.msra.mxu0 0
        %851 = vmatprep.subr.bf16.mxu0 0
        %852 = vmatpush1.bf16.msra.mxu0 0
        %853 = vmatprep.subr.bf16.mxu0 0
        %854 = vmatpush1.bf16.msra.mxu0 0
        %855 = vmatprep.subr.bf16.mxu0 0
        %856 = vmatpush1.bf16.msra.mxu0 0
        %857 = vmatprep.subr.bf16.mxu0 0
        %858 = vmatpush1.bf16.msra.mxu0 0
        %859 = vmatprep.subr.bf16.mxu0 0
        %860 = vmatpush1.bf16.msra.mxu0 0
        %861 = vmatprep.subr.bf16.mxu0 0
        %862 = vmatpush1.bf16.msra.mxu0 0
        %863 = vmatprep.subr.bf16.mxu0 0
        %864 = vmatpush1.bf16.msra.mxu0 0
        %865 = vmatprep.subr.bf16.mxu0 0
        %866 = vmatpush1.bf16.msra.mxu0 0
        %867 = vmatprep.subr.bf16.mxu0 0
        %868 = vmatpush1.bf16.msra.mxu0 0
        %869 = vmatprep.subr.bf16.mxu0 0
        %870 = vmatpush1.bf16.msra.mxu0 0
        %871 = vmatprep.subr.bf16.mxu0 0
        %872 = vmatpush1.bf16.msra.mxu0 0
        %873 = vmatprep.subr.bf16.mxu0 0
        %874 = vmatpush1.bf16.msra.mxu0 0
        %875 = vmatprep.subr.bf16.mxu0 0
        %876 = vmatpush1.bf16.msra.mxu0 0
        %877 = vmatprep.mubr.bf16.mxu0 0
        %878 = vmatmul.mubr.bf16.gmra.mrb[0].mxu0 %v843
        %v879 = vpop.f32.mrb[0].mxu0
        %v880 = vadd.f32 %v691, %v879
        %v881 = vpop.f32.mrb[0].mxu0
        %v882 = vpop.f32.mrb[0].mxu0
        %v883 = vadd.f32 %v692, %v882
        %v884 = vpop.f32.mrb[0].mxu0
        %885 = vdwg.mxu0
        %v886 = vpack.c.bf16 %v883, %v880
        %v887 = vld [vmem:[%s615] sm:$0xf]
        %v888 = vld [vmem:[%s615 + $0x4] sm:$0xf]
        %v889 = vld [vmem:[%s618] sm:$0x1]
        %v891 = vlaneseq
        %v892 = vshrl.u32 %v891, 7
        %v893 = vsub.s32 0, %v892
        %v894 = vrot.slane %v889, %v893
        %v898 = vunpack.c.l.b16 %v887
        %v899 = vunpack.c.l.b16 %v888
        %v900 = vpack.c.b16 %v899, %v898
        %v903 = vsel %vm778, %v886, 0
        %905 = vmatprep.subr.bf16.mxu0 0
        %906 = vmatpush1.bf16.msra.mxu0 %v900
        %907 = vmatprep.subr.bf16.mxu0 0
        %908 = vmatpush1.bf16.msra.mxu0 0
        %909 = vmatprep.subr.bf16.mxu0 0
        %910 = vmatpush1.bf16.msra.mxu0 0
        %911 = vmatprep.subr.bf16.mxu0 0
        %912 = vmatpush1.bf16.msra.mxu0 0
        %913 = vmatprep.subr.bf16.mxu0 0
        %914 = vmatpush1.bf16.msra.mxu0 0
        %915 = vmatprep.subr.bf16.mxu0 0
        %916 = vmatpush1.bf16.msra.mxu0 0
        %917 = vmatprep.subr.bf16.mxu0 0
        %918 = vmatpush1.bf16.msra.mxu0 0
        %919 = vmatprep.subr.bf16.mxu0 0
        %920 = vmatpush1.bf16.msra.mxu0 0
        %921 = vmatprep.subr.bf16.mxu0 0
        %922 = vmatpush1.bf16.msra.mxu0 0
        %923 = vmatprep.subr.bf16.mxu0 0
        %924 = vmatpush1.bf16.msra.mxu0 0
        %925 = vmatprep.subr.bf16.mxu0 0
        %926 = vmatpush1.bf16.msra.mxu0 0
        %927 = vmatprep.subr.bf16.mxu0 0
        %928 = vmatpush1.bf16.msra.mxu0 0
        %929 = vmatprep.subr.bf16.mxu0 0
        %930 = vmatpush1.bf16.msra.mxu0 0
        %931 = vmatprep.subr.bf16.mxu0 0
        %932 = vmatpush1.bf16.msra.mxu0 0
        %933 = vmatprep.subr.bf16.mxu0 0
        %934 = vmatpush1.bf16.msra.mxu0 0
        %935 = vmatprep.subr.bf16.mxu0 0
        %936 = vmatpush1.bf16.msra.mxu0 0
        %937 = vmatprep.mubr.bf16.mxu0 0
        %938 = vmatmul.mubr.bf16.gmra.mrb[0].mxu0 %v903
        %v939 = vpop.f32.mrb[0].mxu0
        %v940 = vadd.f32 %v894, %v939
        %v941 = vpop.f32.mrb[0].mxu0
        %v942 = vpop.f32.mrb[0].mxu0
        %v943 = vadd.f32 %v894, %v942
        %v944 = vpop.f32.mrb[0].mxu0
        %945 = vdwg.mxu0
        %v946 = vsel %vm778, %v940, 0.0
        %v947 = vsel %vm778, %v943, 0.0
        %v948 = vadd.f32 %v946, %v947
        %v949 = vrot.slane %v948, 4
        %v950 = vadd.f32 %v948, %v949
        %v951 = vrot.slane %v950, 2
        %v952 = vadd.f32 %v950, %v951
        %v953 = vrot.slane %v952, 1
        %v954 = vadd.f32 %v952, %v953
        %v955 = vrcp.pop 16.0
        %v956 = vmul.f32 %v954, %v955
        %v957 = vmul.f32 %v940, %v940
        %v958 = vmul.f32 %v943, %v943
        %v959 = vsel %vm778, %v957, 0.0
        %v960 = vsel %vm778, %v958, 0.0
        %v961 = vadd.f32 %v959, %v960
        %v962 = vrot.slane %v961, 4
        %v963 = vadd.f32 %v961, %v962
        %v964 = vrot.slane %v963, 2
        %v965 = vadd.f32 %v963, %v964
        %v966 = vrot.slane %v965, 1
        %v967 = vadd.f32 %v965, %v966
        %v968 = vmul.f32 %v967, %v955
        %v969 = vmul.f32 %v956, %v956
        %v970 = vsub.f32 %v968, %v969
        %v971 = vmax.f32 %v970, 0.0
        %v972 = vsub.f32 %v940, %v956
        %v973 = vsub.f32 %v943, %v956
        %v974 = vadd.f32 %v971, 1e-05
        %v975 = vrsqrt.pop %v974
        %v976 = vmul.f32 %v972, %v975
        %v977 = vmul.f32 %v973, %v975
        %v978 = vld [vmem:[%s621] sm:$0x1]
        %v980 = vlaneseq
        %v981 = vshrl.u32 %v980, 7
        %v982 = vsub.s32 0, %v981
        %v983 = vrot.slane %v978, %v982
        %v985 = vmul.f32 %v976, %v983
        %v986 = vmul.f32 %v977, %v983
        %v987 = vld [vmem:[%s624] sm:$0x1]
        %v989 = vlaneseq
        %v990 = vshrl.u32 %v989, 7
        %v991 = vsub.s32 0, %v990
        %v992 = vrot.slane %v987, %v991
        %v994 = vadd.f32 %v985, %v992
        %v995 = vadd.f32 %v986, %v992
        %v996 = vmax.f32 %v994, 0.0
        %v997 = vmax.f32 %v995, 0.0
        %v998 = vpack.c.bf16 %v997, %v996
        %v999 = vld [vmem:[%s629] sm:$0xf]
        %v1000 = vld [vmem:[%s629 + $0x4] sm:$0xf]
        %v1001 = vld [vmem:[%s537] sm:$0x1]
        %v1003 = vlaneseq
        %v1004 = vshrl.u32 %v1003, 7
        %v1005 = vsub.s32 0, %v1004
        %v1006 = vrot.slane %v1001, %v1005
        %v1010 = vunpack.c.l.b16 %v999
        %v1011 = vunpack.c.l.b16 %v1000
        %v1012 = vpack.c.b16 %v1011, %v1010
        %v1015 = vsel %vm778, %v998, 0
        %1017 = vmatprep.subr.bf16.mxu0 0
        %1018 = vmatpush1.bf16.msra.mxu0 %v1012
        %1019 = vmatprep.subr.bf16.mxu0 0
        %1020 = vmatpush1.bf16.msra.mxu0 0
        %1021 = vmatprep.subr.bf16.mxu0 0
        %1022 = vmatpush1.bf16.msra.mxu0 0
        %1023 = vmatprep.subr.bf16.mxu0 0
        %1024 = vmatpush1.bf16.msra.mxu0 0
        %1025 = vmatprep.subr.bf16.mxu0 0
        %1026 = vmatpush1.bf16.msra.mxu0 0
        %1027 = vmatprep.subr.bf16.mxu0 0
        %1028 = vmatpush1.bf16.msra.mxu0 0
        %1029 = vmatprep.subr.bf16.mxu0 0
        %1030 = vmatpush1.bf16.msra.mxu0 0
        %1031 = vmatprep.subr.bf16.mxu0 0
        %1032 = vmatpush1.bf16.msra.mxu0 0
        %1033 = vmatprep.subr.bf16.mxu0 0
        %1034 = vmatpush1.bf16.msra.mxu0 0
        %1035 = vmatprep.subr.bf16.mxu0 0
        %1036 = vmatpush1.bf16.msra.mxu0 0
        %1037 = vmatprep.subr.bf16.mxu0 0
        %1038 = vmatpush1.bf16.msra.mxu0 0
        %1039 = vmatprep.subr.bf16.mxu0 0
        %1040 = vmatpush1.bf16.msra.mxu0 0
        %1041 = vmatprep.subr.bf16.mxu0 0
        %1042 = vmatpush1.bf16.msra.mxu0 0
        %1043 = vmatprep.subr.bf16.mxu0 0
        %1044 = vmatpush1.bf16.msra.mxu0 0
        %1045 = vmatprep.subr.bf16.mxu0 0
        %1046 = vmatpush1.bf16.msra.mxu0 0
        %1047 = vmatprep.subr.bf16.mxu0 0
        %1048 = vmatpush1.bf16.msra.mxu0 0
        %1049 = vmatprep.mubr.bf16.mxu0 0
        %1050 = vmatmul.mubr.bf16.gmra.mrb[0].mxu0 %v1015
        %v1051 = vpop.f32.mrb[0].mxu0
        %v1052 = vadd.f32 %v1006, %v1051
        %v1053 = vpop.f32.mrb[0].mxu0
        %v1054 = vpop.f32.mrb[0].mxu0
        %v1055 = vadd.f32 %v1006, %v1054
        %v1056 = vpop.f32.mrb[0].mxu0
        %1057 = vdwg.mxu0
        %v1058 = vmax.f32 %v1052, 0.0
        %v1059 = vmax.f32 %v1055, 0.0
        %1060 = vst.msk [vmem:[#allocation2] sm:$0xff] %vm778, %v1058
        %1061 = vst.msk [vmem:[#allocation2 + $0x8] sm:$0xff] %vm778, %v1059
        %p1062 = scmp.eq.s32.totalorder %s28, 2
        // Predicated region
        $region97: #{critic_forward.1} parent=79 // pred_check
          %p1063 = pneg %p1062
        $region98: #{critic_forward.1} parent=79 // pred_check_branch
          %1065 = sbr.rel (%p1063) target = $region100
        $region99: #{critic_forward.1} parent=79 // pred_region
          %v1066 = vlaneseq
          %v1067 = vshrl.u32 %v1066, 7
          %v1068 = vld [vmem:[#allocation7] sm:$0x1]
          %v1069 = vlaneseq
          %v1070 = vshrl.u32 %v1069, 7
          %v1071 = vsub.s32 0, %v1070
          %v1072 = vrot.slane %v1068, %v1071
          %vm1073 = vcmp.eq.s32.totalorder %v1067, %v1072
          %v1074 = vsel %vm1073, 1, 0
          %v1075 = vcvt.s32.f32 %v1074
          %v1076 = vpack.c.bf16 %v1075, %v1075
          %v1077 = vpack.c.bf16 %v1059, %v1058
          %v1078 = vld [vmem:[%s13] sm:$0xf]
          %v1079 = vld [vmem:[%s13 + $0x4] sm:$0xf]
          %v1082 = vunpack.c.l.b16 %v1078
          %v1083 = vunpack.c.l.b16 %v1079
          %v1084 = vpack.c.b16 %v1083, %v1082
          %v1087 = vsel %vm778, %v1077, 0
          %1089 = vmatprep.subr.bf16.mxu0 0
          %1090 = vmatpush1.bf16.msra.mxu0 %v1084
          %1091 = vmatprep.subr.bf16.mxu0 0
          %1092 = vmatpush1.bf16.msra.mxu0 0
          %1093 = vmatprep.subr.bf16.mxu0 0
          %1094 = vmatpush1.bf16.msra.mxu0 0
          %1095 = vmatprep.subr.bf16.mxu0 0
          %1096 = vmatpush1.bf16.msra.mxu0 0
          %1097 = vmatprep.subr.bf16.mxu0 0
          %1098 = vmatpush1.bf16.msra.mxu0 0
          %1099 = vmatprep.subr.bf16.mxu0 0
          %1100 = vmatpush1.bf16.msra.mxu0 0
          %1101 = vmatprep.subr.bf16.mxu0 0
          %1102 = vmatpush1.bf16.msra.mxu0 0
          %1103 = vmatprep.subr.bf16.mxu0 0
          %1104 = vmatpush1.bf16.msra.mxu0 0
          %1105 = vmatprep.subr.bf16.mxu0 0
          %1106 = vmatpush1.bf16.msra.mxu0 0
          %1107 = vmatprep.subr.bf16.mxu0 0
          %1108 = vmatpush1.bf16.msra.mxu0 0
          %1109 = vmatprep.subr.bf16.mxu0 0
          %1110 = vmatpush1.bf16.msra.mxu0 0
          %1111 = vmatprep.subr.bf16.mxu0 0
          %1112 = vmatpush1.bf16.msra.mxu0 0
          %1113 = vmatprep.subr.bf16.mxu0 0
          %1114 = vmatpush1.bf16.msra.mxu0 0
          %1115 = vmatprep.subr.bf16.mxu0 0
          %1116 = vmatpush1.bf16.msra.mxu0 0
          %1117 = vmatprep.subr.bf16.mxu0 0
          %1118 = vmatpush1.bf16.msra.mxu0 0
          %1119 = vmatprep.subr.bf16.mxu0 0
          %1120 = vmatpush1.bf16.msra.mxu0 0
          %1121 = vmatprep.mubr.bf16.mxu0 0
          %1122 = vmatmul.mubr.bf16.gmra.mrb[0].mxu0 %v1087
          %v1123 = vpop.f32.mrb[0].mxu0
          %v1124 = vadd.f32 0.0, %v1123
          %v1125 = vpop.f32.mrb[0].mxu0
          %v1126 = vpop.f32.mrb[0].mxu0
          %v1127 = vadd.f32 0.0, %v1126
          %v1128 = vpop.f32.mrb[0].mxu0
          %1129 = vdwg.mxu0
          %v1130 = vmax.f32 %v1124, 0.0
          %v1131 = vmax.f32 %v1127, 0.0
          %v1132 = vpack.c.bf16 %v1131, %v1130
          %v1133 = vld [vmem:[%s14] sm:$0xf]
          %v1134 = vld [vmem:[%s14 + $0x4] sm:$0xf]
          %v1135 = vld [vmem:[%s14 + $0x8] sm:$0xf]
          %v1136 = vld [vmem:[%s14 + $0xc] sm:$0xf]
          %v1141 = vunpack.c.l.b16 %v1133
          %v1142 = vunpack.c.l.b16 %v1134
          %v1143 = vunpack.c.l.b16 %v1135
          %v1144 = vunpack.c.l.b16 %v1136
          %v1145 = vpack.c.b16 %v1142, %v1141
          %v1146 = vpack.c.b16 %v1144, %v1143
          %v1150 = vsel %vm841, %v1132, 0
          %1152 = vmatprep.subr.bf16.mxu0 0
          %1153 = vmatpush1.bf16.msra.mxu0 %v1145
          %1154 = vmatprep.subr.bf16.mxu0 0
          %1155 = vmatpush1.bf16.msra.mxu0 %v1146
          %1156 = vmatprep.subr.bf16.mxu0 0
          %1157 = vmatpush1.bf16.msra.mxu0 0
          %1158 = vmatprep.subr.bf16.mxu0 0
          %1159 = vmatpush1.bf16.msra.mxu0 0
          %1160 = vmatprep.subr.bf16.mxu0 0
          %1161 = vmatpush1.bf16.msra.mxu0 0
          %1162 = vmatprep.subr.bf16.mxu0 0
          %1163 = vmatpush1.bf16.msra.mxu0 0
          %1164 = vmatprep.subr.bf16.mxu0 0
          %1165 = vmatpush1.bf16.msra.mxu0 0
          %1166 = vmatprep.subr.bf16.mxu0 0
          %1167 = vmatpush1.bf16.msra.mxu0 0
          %1168 = vmatprep.subr.bf16.mxu0 0
          %1169 = vmatpush1.bf16.msra.mxu0 0
          %1170 = vmatprep.subr.bf16.mxu0 0
          %1171 = vmatpush1.bf16.msra.mxu0 0
          %1172 = vmatprep.subr.bf16.mxu0 0
          %1173 = vmatpush1.bf16.msra.mxu0 0
          %1174 = vmatprep.subr.bf16.mxu0 0
          %1175 = vmatpush1.bf16.msra.mxu0 0
          %1176 = vmatprep.subr.bf16.mxu0 0
          %1177 = vmatpush1.bf16.msra.mxu0 0
          %1178 = vmatprep.subr.bf16.mxu0 0
          %1179 = vmatpush1.bf16.msra.mxu0 0
          %1180 = vmatprep.subr.bf16.mxu0 0
          %1181 = vmatpush1.bf16.msra.mxu0 0
          %1182 = vmatprep.subr.bf16.mxu0 0
          %1183 = vmatpush1.bf16.msra.mxu0 0
          %1184 = vmatprep.mubr.bf16.mxu0 0
          %1185 = vmatmul.mubr.bf16.gmra.mrb[0].mxu0 %v1150
          %v1186 = vpop.f32.mrb[0].mxu0
          %v1187 = vadd.f32 0.0, %v1186
          %v1188 = vpop.f32.mrb[0].mxu0
          %v1189 = vpop.f32.mrb[0].mxu0
          %v1190 = vadd.f32 0.0, %v1189
          %v1191 = vpop.f32.mrb[0].mxu0
          %1192 = vdwg.mxu0
          %v1193 = vmax.f32 %v1187, 0.0
          %v1194 = vmax.f32 %v1190, 0.0
          %vm1195 = vcmask 64512
          %v1196 = vsel %vm1195, %v1193, 0.0
          %1197 = vadd.xlane.f32.xlu0 %v1196
          %v1198 = vpop.xlane.xlu0 %1197
          %v1199 = vsel %vm1195, %v1194, 0.0
          %1200 = vadd.xlane.f32.xlu0 %v1199
          %v1201 = vpop.xlane.xlu0 %1200
          %v1202 = vpack.c.bf16 %v1201, %v1198
          %v1204 = vsel %vm778, %v1076, 0
          %1206 = vmatprep.subr.bf16.mxu0 0
          %1207 = vmatpush1.bf16.msra.mxu0 %v1202
          %1208 = vmatprep.subr.bf16.mxu0 0
          %1209 = vmatpush1.bf16.msra.mxu0 0
          %1210 = vmatprep.subr.bf16.mxu0 0
          %1211 = vmatpush1.bf16.msra.mxu0 0
          %1212 = vmatprep.subr.bf16.mxu0 0
          %1213 = vmatpush1.bf16.msra.mxu0 0
          %1214 = vmatprep.subr.bf16.mxu0 0
          %1215 = vmatpush1.bf16.msra.mxu0 0
          %1216 = vmatprep.subr.bf16.mxu0 0
          %1217 = vmatpush1.bf16.msra.mxu0 0
          %1218 = vmatprep.subr.bf16.mxu0 0
          %1219 = vmatpush1.bf16.msra.mxu0 0
          %1220 = vmatprep.subr.bf16.mxu0 0
          %1221 = vmatpush1.bf16.msra.mxu0 0
          %1222 = vmatprep.subr.bf16.mxu0 0
          %1223 = vmatpush1.bf16.msra.mxu0 0
          %1224 = vmatprep.subr.bf16.mxu0 0
          %1225 = vmatpush1.bf16.msra.mxu0 0
          %1226 = vmatprep.subr.bf16.mxu0 0
          %1227 = vmatpush1.bf16.msra.mxu0 0
          %1228 = vmatprep.subr.bf16.mxu0 0
          %1229 = vmatpush1.bf16.msra.mxu0 0
          %1230 = vmatprep.subr.bf16.mxu0 0
          %1231 = vmatpush1.bf16.msra.mxu0 0
          %1232 = vmatprep.subr.bf16.mxu0 0
          %1233 = vmatpush1.bf16.msra.mxu0 0
          %1234 = vmatprep.subr.bf16.mxu0 0
          %1235 = vmatpush1.bf16.msra.mxu0 0
          %1236 = vmatprep.subr.bf16.mxu0 0
          %1237 = vmatpush1.bf16.msra.mxu0 0
          %1238 = vmatprep.mubr.bf16.mxu0 0
          %1239 = vmatmul.mubr.bf16.gmra.mrb[0].mxu0 %v1204
          %v1240 = vpop.f32.mrb[0].mxu0
          %v1241 = vadd.f32 0.0, %v1240
          %v1242 = vpop.f32.mrb[0].mxu0
          %v1243 = vpop.f32.mrb[0].mxu0
          %v1244 = vpop.f32.mrb[0].mxu0
          %1245 = vdwg.mxu0
          %vm1246 = vcmask 1024
          %1247 = vst.msk [vmem:[%s15] sm:$0x3] %vm1246, %v1241
        $region100: #{critic_forward.1} parent=79 // pred_fallthru
          _
        // Predicated region
        $region101: #{critic_forward.1} parent=79 // pred_check
          %p1248 = pneg %p396
        $region102: #{critic_forward.1} parent=79 // pred_check_branch
          %1250 = sbr.rel (%p1248) target = $region104
        $region103: #{critic_forward.1} parent=79 // pred_region
          _
        $region104: #{critic_forward.1} parent=79 // pred_fallthru
          _
        // Predicated region
        $region105: #{critic_forward.1} parent=79 // pred_check
          %p1251 = pneg %p396
        $region106: #{critic_forward.1} parent=79 // pred_check_branch
          %1253 = sbr.rel (%p1251) target = $region108
        $region107: #{critic_forward.1} parent=79 // pred_region
          _
        $region108: #{critic_forward.1} parent=79 // pred_fallthru
          _
      $region80: #{critic_forward.1} parent=5 // pred_fallthru
        _
      %p1254 = scmp.le.s32.totalorder 2, %s23
      // Predicated region
      $region109: #{critic_forward.1} parent=5 // pred_check
        %p1255 = pneg %p1254
      $region110: #{critic_forward.1} parent=5 // pred_check_branch
        %1257 = sbr.rel (%p1255) target = $region112
      $region111: #{critic_forward.1} parent=5 // pred_region
        %s1258 = ssub.s32 %s23, 2
      $region112: #{critic_forward.1} parent=5 // pred_fallthru
        _
    $region6: #{critic_forward.1} parent=1 // loop_footer
      %s27 = sadd.s32 1, %s23
    $region7: #{critic_forward.1} parent=1 // loop_footer_branch
      %22 = sbr.rel target = $region3
    $region8: #{critic_forward.1} parent=1 // loop_exit
      _
    %1259 = vsyncpa [#allocation6], 1
    %s1260 = scalar_lea.sflag [#allocation6], 1
    %1261 = vsyncpa %s1260, 1
    %1262 = vsyncpa [#allocation8], 1

</llo_original>
